<compile_context>
chip_gen: v7x
topology: tpu7x:2x2x1
jax: 0.10.0
libtpu: 0.0.40
codegen_flags: <defaults>
</compile_context>

<pallas_src>
import numpy as np
import jax
import jax.numpy as jnp
from jax.experimental import pallas as pl
from jax.experimental.pallas import tpu as pltpu


RRELU_SLOPE = 11.0 / 48.0  # eval-mode nn.RReLU negative slope


def _round_up(x, m):
    return -(-x // m) * m


def _make_fused_kernel(n, pulls, width, slab_k, rtab_off, bias_lane,
                       out_off, reward_off, lever_off):
    """Fused kernel for fixed (n, pulls, width) and packed-slab layouts."""
    n_modules = pulls - 1

    def kernel(init_ref, w1_ref, w2_ref, w3_ref, w4_ref, out_ref, slab_ref):
        def rrelu(h):
            return jnp.where(h > 0.0, h, RRELU_SLOPE * h)

        def row_argmax(x):
            # deterministic smallest-index argmax per row -> (B, 1) int32
            mx = jnp.max(x, axis=-1, keepdims=True)
            idx = jax.lax.broadcasted_iota(jnp.int32, x.shape, 1)
            cand = jnp.where(x == mx, idx, jnp.int32(x.shape[-1]))
            return jnp.min(cand, axis=-1, keepdims=True)

        # Reward table lives in the (otherwise zero-weighted) tail lanes of the
        # init slab, so it does not need its own input DMA.
        rtab = init_ref[:, rtab_off:rtab_off + n]            # (B, n)
        lane_idx = jax.lax.broadcasted_iota(jnp.int32, rtab.shape, 1)

        def row_reward(lever):
            # gather rtab[i, lever[i]] -> (B, 1) float32
            return jnp.sum(jnp.where(lane_idx == lever, rtab, 0.0),
                           axis=-1, keepdims=True)

        def store_pull(p, lever, reward):
            out_ref[:, reward_off + p:reward_off + p + 1] = reward
            out_ref[:, lever_off + p:lever_off + p + 1] = (
                lever.astype(jnp.float32))

        # Zero the packed output slab once; fill lanes incrementally below.
        out_ref[...] = jnp.zeros_like(out_ref)
        # Persistent input slab: x0 + bias-1 lane + reward table (from wrapper).
        slab_ref[...] = init_ref[...]

        # Pull 0: argmax of the random input, reward from the table.
        x0 = init_ref[:, 0:n]
        lever = row_argmax(x0)
        pending_reward = row_reward(lever)                   # reward of pull m
        store_pull(0, lever, pending_reward)

        for m in range(n_modules):
            w1p = w1_ref[m]                                  # (slab_k, width+1)
            w2p = w2_ref[m]                                  # (width+1, width+1)
            w3p = w3_ref[m]
            w4p = w4_ref[m]                                  # (width+1, n)

            # W1 row holding the weights for the freshest reward (pull m).
            r_row = m * (n + 1) + n

            # Main dot depends only on the slab (x0 / previous outs / previous
            # rewards); the freshest reward is added as a rank-1 VPU update so
            # the argmax+gather XLU work overlaps with this MXU matmul.
            main = jnp.dot(slab_ref[...], w1p,
                           preferred_element_type=jnp.float32)
            h = rrelu(main + pending_reward * w1p[r_row:r_row + 1, :])

            # Commit the reward to the slab for later modules (after the read).
            if m + 1 < n_modules:
                slab_ref[:, r_row:r_row + 1] = pending_reward

            # Hidden layers: biases folded in via the constant-1 column.
            h = rrelu(jnp.dot(h, w2p, preferred_element_type=jnp.float32))
            h = rrelu(jnp.dot(h, w3p, preferred_element_type=jnp.float32))
            h4 = rrelu(jnp.dot(h, w4p, preferred_element_type=jnp.float32))

            # softmax over last axis (== nn.Softmax(dim=2) on (B, 1, n))
            mx = jnp.max(h4, axis=-1, keepdims=True)
            e = jnp.exp(h4 - mx)
            out = e * pl.reciprocal(jnp.sum(e, axis=-1, keepdims=True),
                                    approx=True)

            # Incremental stores at static offsets (no epilogue concats).
            out_ref[:, out_off + m * n:out_off + (m + 1) * n] = out
            if m + 1 < n_modules:
                off = (m + 1) * (n + 1)
                slab_ref[:, off:off + n] = out

            # Next pull's lever/reward (overlaps with next module's matmul).
            lever = row_argmax(out)
            pending_reward = row_reward(lever)
            store_pull(m + 1, lever, pending_reward)

    return kernel


@jax.jit
def _fused_forward(x0, rtab, params_list):
    """Pack inputs/weights into lane-dense slabs, run the fused kernel."""
    B, n = x0.shape
    n_modules = len(params_list)
    pulls = n_modules + 1
    width = params_list[0]["w2"].shape[0]
    w1cols = width + 1                      # extra constant-1 hidden column

    # Input-slab layout: [slot0..slot(pulls-1)] [reward table] ... [bias-1]
    rtab_off = pulls * (n + 1)
    slab_k = _round_up(rtab_off + n + 1, 128)
    bias_lane = slab_k - 1

    # Output-slab layout: [module outs] [rewards] [levers] (lane-dense, f32)
    out_off = 0
    reward_off = n_modules * n
    lever_off = reward_off + pulls
    out_k = _round_up(lever_off + pulls, 128)

    b_pad = _round_up(B, 8)                 # sublane multiple

    # --- lane-dense init slab: x0, reward table, bias-1 lane ---------------
    init = jnp.zeros((b_pad, slab_k), jnp.float32)
    init = init.at[:B, 0:n].set(x0)
    init = init.at[:B, rtab_off:rtab_off + n].set(rtab)
    init = init.at[:, bias_lane].set(1.0)

    # --- pack all weights + biases into 4 per-layer K-padded slabs ---------
    w1_all = jnp.zeros((n_modules, slab_k, w1cols), jnp.float32)
    w2_all = jnp.zeros((n_modules, w1cols, w1cols), jnp.float32)
    w3_all = jnp.zeros((n_modules, w1cols, w1cols), jnp.float32)
    w4_all = jnp.zeros((n_modules, w1cols, n), jnp.float32)
    for m, p in enumerate(params_list):
        k_in = (m + 1) * (n + 1)            # true fan-in of module m's W1
        w1_all = w1_all.at[m, 0:k_in, 0:width].set(p["w1"])
        w1_all = w1_all.at[m, bias_lane, 0:width].set(p["b1"][0])
        w1_all = w1_all.at[m, bias_lane, width].set(1.0)     # const-1 column
        w2_all = w2_all.at[m, 0:width, 0:width].set(p["w2"])
        w2_all = w2_all.at[m, width, 0:width].set(p["b2"][0])
        w2_all = w2_all.at[m, width, width].set(1.0)
        w3_all = w3_all.at[m, 0:width, 0:width].set(p["w3"])
        w3_all = w3_all.at[m, width, 0:width].set(p["b3"][0])
        w3_all = w3_all.at[m, width, width].set(1.0)
        w4_all = w4_all.at[m, 0:width, :].set(p["w4"])
        w4_all = w4_all.at[m, width, :].set(p["b4"][0])

    vmem = pl.BlockSpec(memory_space=pltpu.MemorySpace.VMEM)
    packed = pl.pallas_call(
        _make_fused_kernel(n, pulls, width, slab_k, rtab_off, bias_lane,
                           out_off, reward_off, lever_off),
        out_shape=jax.ShapeDtypeStruct((b_pad, out_k), jnp.float32),
        in_specs=[vmem] * 5,
        out_specs=vmem,
        scratch_shapes=[pltpu.VMEM((b_pad, slab_k), jnp.float32)],
    )(init, w1_all, w2_all, w3_all, w4_all)

    outs = packed[:B, out_off:out_off + n_modules * n]
    rewards = packed[:B, reward_off:reward_off + pulls]
    levers = jnp.round(
        packed[:B, lever_off:lever_off + pulls]).astype(jnp.int32)
    return outs, levers, rewards


def _init_linear(key, fan_in, fan_out):
    """PyTorch-style Linear init, stored as (in, out) weight + (1, out) bias."""
    kw, kb = jax.random.split(key)
    bound = 1.0 / np.sqrt(fan_in)
    w = jax.random.uniform(kw, (fan_in, fan_out), jnp.float32, -bound, bound)
    b = jax.random.uniform(kb, (1, fan_out), jnp.float32, -bound, bound)
    return w, b


def init_params(key, n, pulls, module_width):
    """Parameters for modules i = 1 .. pulls-1; module i has input i*(n+1)."""
    params_list = []
    for i in range(1, pulls):
        key, k1, k2, k3, k4 = jax.random.split(key, 5)
        w1, b1 = _init_linear(k1, i * (n + 1), module_width)
        w2, b2 = _init_linear(k2, module_width, module_width)
        w3, b3 = _init_linear(k3, module_width, module_width)
        w4, b4 = _init_linear(k4, module_width, n)
        params_list.append(dict(w1=w1, b1=b1, w2=w2, b2=b2,
                                w3=w3, b3=b3, w4=w4, b4=b4))
    return params_list


class RewardGenerator:
    """Deterministic, table-backed stand-in for the PyTorch RewardGenerator."""

    def __init__(self, lever_rewards):
        self.lever_rewards = np.asarray(lever_rewards, dtype=np.float32)

    def get_reward(self, lever):
        return float(self.lever_rewards[int(lever)])


def mab_inception_forward(reward_generators, params_list, n, key):
    """Mirrors MABInceptionModelGPU.forward (eval mode, no dropout)."""
    B = len(reward_generators)

    # Reward generators as an on-device (B, n) lookup table.
    rtab = jnp.asarray(np.stack(
        [np.asarray(rg.lever_rewards, np.float32) for rg in reward_generators]))

    # Initial random input in [0, 1); first lever pull = argmax per row.
    x0 = jax.random.uniform(key, (B, n), jnp.float32)

    outs, levers_dev, rewards_dev = _fused_forward(x0, rtab, params_list)

    # Single device->host transfer for the bookkeeping lists.
    levers_host = np.asarray(levers_dev)
    rewards_host = np.asarray(rewards_dev)
    levers = [[int(v) for v in row] for row in levers_host]
    rewards = [[float(v) for v in row] for row in rewards_host]

    # Restore the PyTorch (B, 1, (pulls-1)*n) layout for the returned tensor.
    module_outputs = outs.reshape(B, 1, -1)
    return module_outputs, levers, rewards


if __name__ == "__main__":
    # Small shapes consistent with the module's forward:
    #   n (levers) = 8, pulls = 5 -> 4 modules, module_width = 32, batch = 2.
    n = 8
    pulls = 5
    module_width = 32
    batch = 2

    root = jax.random.PRNGKey(0)
    k_params, k_input, k_rgen = jax.random.split(root, 3)

    params_list = init_params(k_params, n, pulls, module_width)

    # Deterministic per-lever rewards for each batch element.
    rgen_table = np.asarray(
        jax.random.uniform(k_rgen, (batch, n), jnp.float32))
    reward_generators = [RewardGenerator(rgen_table[i]) for i in range(batch)]

    module_outputs, levers, rewards = mab_inception_forward(
        reward_generators, params_list, n, k_input)
    jax.block_until_ready(module_outputs)

    assert module_outputs.shape == (batch, 1, (pulls - 1) * n)
    assert all(len(l) == pulls for l in levers)
    assert all(len(r) == pulls for r in rewards)
    # Each module output row is a softmax -> sums to ~1 (approx reciprocal on
    # the EUP trades a tiny relative error for a free divide).
    sums = np.asarray(module_outputs).reshape(batch, pulls - 1, n).sum(-1)
    assert np.allclose(sums, 1.0, atol=5e-3)
    # Lever indices must be valid and rewards returned by the kernel must
    # match the reward table at the chosen lever for every pull.
    for i in range(batch):
        for p in range(pulls):
            assert 0 <= levers[i][p] < n
            assert abs(rewards[i][p] - float(rgen_table[i][levers[i][p]])) < 1e-6

    print("KERNEL_OK")
</pallas_src>

<mosaic_0001>
module attributes {stable_mosaic.version = 11 : i64} {
  func.func @kernel(%arg0: memref<8x128xf32, #tpu.memory_space<vmem>>, %arg1: memref<4x128x33xf32, #tpu.memory_space<vmem>>, %arg2: memref<4x33x33xf32, #tpu.memory_space<vmem>>, %arg3: memref<4x33x33xf32, #tpu.memory_space<vmem>>, %arg4: memref<4x33x8xf32, #tpu.memory_space<vmem>>, %arg5: memref<8x128xf32, #tpu.memory_space<vmem>>, %arg6: memref<8x128xf32, #tpu.memory_space<vmem>>) attributes {dimension_semantics = [], scalar_prefetch = 0 : i64, scratch_operands = 1 : i64, tpu.core_type = #tpu.core_type<tc>} {
    %c0 = arith.constant 0 : index
    %c45 = arith.constant 45 : index
    %0 = vector.load %arg0[%c0, %c45] : memref<8x128xf32, #tpu.memory_space<vmem>>, vector<8x8xf32>
    %1 = tpu.iota {dimensions = array<i32: 1>} : vector<8x8xi32>
    %cst = arith.constant 0.000000e+00 : f32
    %2 = vector.broadcast %cst : f32 to vector<8x128xf32>
    %c0_0 = arith.constant 0 : index
    %c0_1 = arith.constant 0 : index
    %3 = vector.load %arg5[%c0_0, %c0_1] : memref<8x128xf32, #tpu.memory_space<vmem>>, vector<8x128xf32>
    tpu.vector_store %arg5[%c0_0, %c0_1], %2 {strides = array<i32>} : memref<8x128xf32, #tpu.memory_space<vmem>>, vector<8x128xf32>,
    %c0_2 = arith.constant 0 : index
    %c0_3 = arith.constant 0 : index
    %4 = vector.load %arg0[%c0_2, %c0_3] : memref<8x128xf32, #tpu.memory_space<vmem>>, vector<8x128xf32>
    %c0_4 = arith.constant 0 : index
    %c0_5 = arith.constant 0 : index
    %5 = vector.load %arg6[%c0_4, %c0_5] : memref<8x128xf32, #tpu.memory_space<vmem>>, vector<8x128xf32>
    tpu.vector_store %arg6[%c0_4, %c0_5], %4 {strides = array<i32>} : memref<8x128xf32, #tpu.memory_space<vmem>>, vector<8x128xf32>,
    %c0_6 = arith.constant 0 : index
    %c0_7 = arith.constant 0 : index
    %6 = vector.load %arg0[%c0_6, %c0_7] : memref<8x128xf32, #tpu.memory_space<vmem>>, vector<8x8xf32>
    %cst_8 = arith.constant dense<0xFF800000> : vector<8xf32>
    %7 = vector.multi_reduction <maximumf>, %6, %cst_8 [1] : vector<8x8xf32> to vector<8xf32>
    %8 = vector.shape_cast %7 : vector<8xf32> to vector<8x1xf32>
    %9 = tpu.iota {dimensions = array<i32: 1>} : vector<8x8xi32>
    %10 = vector.broadcast %8 : vector<8x1xf32> to vector<8x8xf32>
    %11 = arith.cmpf oeq, %6, %10 : vector<8x8xf32>
    %c8_i32 = arith.constant 8 : i32
    %12 = vector.broadcast %c8_i32 : i32 to vector<8x8xi32>
    %13 = arith.select %11, %9, %12 : vector<8x8xi1>, vector<8x8xi32>
    %cst_9 = arith.constant dense<2147483647> : vector<8xi32>
    %14 = vector.multi_reduction <minsi>, %13, %cst_9 [1] : vector<8x8xi32> to vector<8xi32>
    %15 = vector.shape_cast %14 : vector<8xi32> to vector<8x1xi32>
    %16 = vector.broadcast %15 : vector<8x1xi32> to vector<8x8xi32>
    %17 = arith.cmpi eq, %1, %16 : vector<8x8xi32>
    %cst_10 = arith.constant 0.000000e+00 : f32
    %18 = vector.broadcast %cst_10 : f32 to vector<8x8xf32>
    %19 = arith.select %17, %0, %18 : vector<8x8xi1>, vector<8x8xf32>
    %cst_11 = arith.constant dense<0.000000e+00> : vector<8xf32>
    %20 = vector.multi_reduction <add>, %19, %cst_11 [1] : vector<8x8xf32> to vector<8xf32>
    %21 = vector.shape_cast %20 : vector<8xf32> to vector<8x1xf32>
    %c0_12 = arith.constant 0 : index
    %c32 = arith.constant 32 : index
    %22 = vector.load %arg5[%c0_12, %c32] : memref<8x128xf32, #tpu.memory_space<vmem>>, vector<8x1xf32>
    tpu.vector_store %arg5[%c0_12, %c32], %21 {strides = array<i32>} : memref<8x128xf32, #tpu.memory_space<vmem>>, vector<8x1xf32>,
    %23 = arith.sitofp %15 : vector<8x1xi32> to vector<8x1xf32>
    %c0_13 = arith.constant 0 : index
    %c37 = arith.constant 37 : index
    %24 = vector.load %arg5[%c0_13, %c37] : memref<8x128xf32, #tpu.memory_space<vmem>>, vector<8x1xf32>
    tpu.vector_store %arg5[%c0_13, %c37], %23 {strides = array<i32>} : memref<8x128xf32, #tpu.memory_space<vmem>>, vector<8x1xf32>,
    %c0_14 = arith.constant 0 : index
    %c0_15 = arith.constant 0 : index
    %c0_16 = arith.constant 0 : index
    %25 = vector.load %arg1[%c0_14, %c0_15, %c0_16] : memref<4x128x33xf32, #tpu.memory_space<vmem>>, vector<1x128x33xf32>
    %26 = vector.shape_cast %25 : vector<1x128x33xf32> to vector<128x33xf32>
    %c0_17 = arith.constant 0 : index
    %c0_18 = arith.constant 0 : index
    %c0_19 = arith.constant 0 : index
    %27 = vector.load %arg2[%c0_17, %c0_18, %c0_19] : memref<4x33x33xf32, #tpu.memory_space<vmem>>, vector<1x33x33xf32>
    %28 = vector.shape_cast %27 : vector<1x33x33xf32> to vector<33x33xf32>
    %c0_20 = arith.constant 0 : index
    %c0_21 = arith.constant 0 : index
    %c0_22 = arith.constant 0 : index
    %29 = vector.load %arg3[%c0_20, %c0_21, %c0_22] : memref<4x33x33xf32, #tpu.memory_space<vmem>>, vector<1x33x33xf32>
    %30 = vector.shape_cast %29 : vector<1x33x33xf32> to vector<33x33xf32>
    %c0_23 = arith.constant 0 : index
    %c0_24 = arith.constant 0 : index
    %c0_25 = arith.constant 0 : index
    %31 = vector.load %arg4[%c0_23, %c0_24, %c0_25] : memref<4x33x8xf32, #tpu.memory_space<vmem>>, vector<1x33x8xf32>
    %32 = vector.shape_cast %31 : vector<1x33x8xf32> to vector<33x8xf32>
    %c0_26 = arith.constant 0 : index
    %c0_27 = arith.constant 0 : index
    %33 = vector.load %arg6[%c0_26, %c0_27] : memref<8x128xf32, #tpu.memory_space<vmem>>, vector<8x128xf32>
    %cst_28 = arith.constant dense<0.000000e+00> : vector<8x33xf32>
    %34 = tpu.matmul %33, %26, %cst_28 {dimension_numbers = #tpu.dot_dimension_numbers<[1], [0], [0], [1], [0, 0, 1, 1], [], []>} : vector<8x128xf32>, vector<128x33xf32>, vector<8x33xf32> -> vector<8x33xf32>
    %35 = vector.extract_strided_slice %26 {offsets = [8, 0], sizes = [1, 33], strides = [1, 1]} : vector<128x33xf32> to vector<1x33xf32>
    %36 = vector.broadcast %21 : vector<8x1xf32> to vector<8x33xf32>
    %37 = vector.broadcast %35 : vector<1x33xf32> to vector<8x33xf32>
    %38 = arith.mulf %36, %37 : vector<8x33xf32>
    %39 = arith.addf %34, %38 : vector<8x33xf32>
    %cst_29 = arith.constant 0.000000e+00 : f32
    %40 = vector.broadcast %cst_29 : f32 to vector<8x33xf32>
    %41 = arith.cmpf ogt, %39, %40 : vector<8x33xf32>
    %cst_30 = arith.constant 0.229166672 : f32
    %42 = vector.broadcast %cst_30 : f32 to vector<8x33xf32>
    %43 = arith.mulf %42, %39 : vector<8x33xf32>
    %44 = arith.select %41, %39, %43 : vector<8x33xi1>, vector<8x33xf32>
    %c0_31 = arith.constant 0 : index
    %c8 = arith.constant 8 : index
    %45 = vector.load %arg6[%c0_31, %c8] : memref<8x128xf32, #tpu.memory_space<vmem>>, vector<8x1xf32>
    tpu.vector_store %arg6[%c0_31, %c8], %21 {strides = array<i32>} : memref<8x128xf32, #tpu.memory_space<vmem>>, vector<8x1xf32>,
    %cst_32 = arith.constant dense<0.000000e+00> : vector<8x33xf32>
    %46 = tpu.matmul %44, %28, %cst_32 {dimension_numbers = #tpu.dot_dimension_numbers<[1], [0], [0], [1], [0, 0, 1, 1], [], []>} : vector<8x33xf32>, vector<33x33xf32>, vector<8x33xf32> -> vector<8x33xf32>
    %cst_33 = arith.constant 0.000000e+00 : f32
    %47 = vector.broadcast %cst_33 : f32 to vector<8x33xf32>
    %48 = arith.cmpf ogt, %46, %47 : vector<8x33xf32>
    %cst_34 = arith.constant 0.229166672 : f32
    %49 = vector.broadcast %cst_34 : f32 to vector<8x33xf32>
    %50 = arith.mulf %49, %46 : vector<8x33xf32>
    %51 = arith.select %48, %46, %50 : vector<8x33xi1>, vector<8x33xf32>
    %cst_35 = arith.constant dense<0.000000e+00> : vector<8x33xf32>
    %52 = tpu.matmul %51, %30, %cst_35 {dimension_numbers = #tpu.dot_dimension_numbers<[1], [0], [0], [1], [0, 0, 1, 1], [], []>} : vector<8x33xf32>, vector<33x33xf32>, vector<8x33xf32> -> vector<8x33xf32>
    %cst_36 = arith.constant 0.000000e+00 : f32
    %53 = vector.broadcast %cst_36 : f32 to vector<8x33xf32>
    %54 = arith.cmpf ogt, %52, %53 : vector<8x33xf32>
    %cst_37 = arith.constant 0.229166672 : f32
    %55 = vector.broadcast %cst_37 : f32 to vector<8x33xf32>
    %56 = arith.mulf %55, %52 : vector<8x33xf32>
    %57 = arith.select %54, %52, %56 : vector<8x33xi1>, vector<8x33xf32>
    %cst_38 = arith.constant dense<0.000000e+00> : vector<8x8xf32>
    %58 = tpu.matmul %57, %32, %cst_38 {dimension_numbers = #tpu.dot_dimension_numbers<[1], [0], [0], [1], [0, 0, 1, 1], [], []>} : vector<8x33xf32>, vector<33x8xf32>, vector<8x8xf32> -> vector<8x8xf32>
    %cst_39 = arith.constant 0.000000e+00 : f32
    %59 = vector.broadcast %cst_39 : f32 to vector<8x8xf32>
    %60 = arith.cmpf ogt, %58, %59 : vector<8x8xf32>
    %cst_40 = arith.constant 0.229166672 : f32
    %61 = vector.broadcast %cst_40 : f32 to vector<8x8xf32>
    %62 = arith.mulf %61, %58 : vector<8x8xf32>
    %63 = arith.select %60, %58, %62 : vector<8x8xi1>, vector<8x8xf32>
    %cst_41 = arith.constant dense<0xFF800000> : vector<8xf32>
    %64 = vector.multi_reduction <maximumf>, %63, %cst_41 [1] : vector<8x8xf32> to vector<8xf32>
    %65 = vector.shape_cast %64 : vector<8xf32> to vector<8x1xf32>
    %66 = vector.broadcast %65 : vector<8x1xf32> to vector<8x8xf32>
    %67 = arith.subf %63, %66 : vector<8x8xf32>
    %68 = math.exp %67 : vector<8x8xf32>
    %cst_42 = arith.constant dense<0.000000e+00> : vector<8xf32>
    %69 = vector.multi_reduction <add>, %68, %cst_42 [1] : vector<8x8xf32> to vector<8xf32>
    %70 = vector.shape_cast %69 : vector<8xf32> to vector<8x1xf32>
    %71 = tpu.reciprocal %70 {approx = true} : vector<8x1xf32> -> vector<8x1xf32>
    %72 = vector.broadcast %71 : vector<8x1xf32> to vector<8x8xf32>
    %73 = arith.mulf %68, %72 : vector<8x8xf32>
    %c0_43 = arith.constant 0 : index
    %c0_44 = arith.constant 0 : index
    %74 = vector.load %arg5[%c0_43, %c0_44] : memref<8x128xf32, #tpu.memory_space<vmem>>, vector<8x8xf32>
    tpu.vector_store %arg5[%c0_43, %c0_44], %73 {strides = array<i32>} : memref<8x128xf32, #tpu.memory_space<vmem>>, vector<8x8xf32>,
    %c0_45 = arith.constant 0 : index
    %c9 = arith.constant 9 : index
    %75 = vector.load %arg6[%c0_45, %c9] : memref<8x128xf32, #tpu.memory_space<vmem>>, vector<8x8xf32>
    tpu.vector_store %arg6[%c0_45, %c9], %73 {strides = array<i32>} : memref<8x128xf32, #tpu.memory_space<vmem>>, vector<8x8xf32>,
    %cst_46 = arith.constant dense<0xFF800000> : vector<8xf32>
    %76 = vector.multi_reduction <maximumf>, %73, %cst_46 [1] : vector<8x8xf32> to vector<8xf32>
    %77 = vector.shape_cast %76 : vector<8xf32> to vector<8x1xf32>
    %78 = tpu.iota {dimensions = array<i32: 1>} : vector<8x8xi32>
    %79 = vector.broadcast %77 : vector<8x1xf32> to vector<8x8xf32>
    %80 = arith.cmpf oeq, %73, %79 : vector<8x8xf32>
    %c8_i32_47 = arith.constant 8 : i32
    %81 = vector.broadcast %c8_i32_47 : i32 to vector<8x8xi32>
    %82 = arith.select %80, %78, %81 : vector<8x8xi1>, vector<8x8xi32>
    %cst_48 = arith.constant dense<2147483647> : vector<8xi32>
    %83 = vector.multi_reduction <minsi>, %82, %cst_48 [1] : vector<8x8xi32> to vector<8xi32>
    %84 = vector.shape_cast %83 : vector<8xi32> to vector<8x1xi32>
    %85 = vector.broadcast %84 : vector<8x1xi32> to vector<8x8xi32>
    %86 = arith.cmpi eq, %1, %85 : vector<8x8xi32>
    %cst_49 = arith.constant 0.000000e+00 : f32
    %87 = vector.broadcast %cst_49 : f32 to vector<8x8xf32>
    %88 = arith.select %86, %0, %87 : vector<8x8xi1>, vector<8x8xf32>
    %cst_50 = arith.constant dense<0.000000e+00> : vector<8xf32>
    %89 = vector.multi_reduction <add>, %88, %cst_50 [1] : vector<8x8xf32> to vector<8xf32>
    %90 = vector.shape_cast %89 : vector<8xf32> to vector<8x1xf32>
    %c0_51 = arith.constant 0 : index
    %c33 = arith.constant 33 : index
    %91 = vector.load %arg5[%c0_51, %c33] : memref<8x128xf32, #tpu.memory_space<vmem>>, vector<8x1xf32>
    tpu.vector_store %arg5[%c0_51, %c33], %90 {strides = array<i32>} : memref<8x128xf32, #tpu.memory_space<vmem>>, vector<8x1xf32>,
    %92 = arith.sitofp %84 : vector<8x1xi32> to vector<8x1xf32>
    %c0_52 = arith.constant 0 : index
    %c38 = arith.constant 38 : index
    %93 = vector.load %arg5[%c0_52, %c38] : memref<8x128xf32, #tpu.memory_space<vmem>>, vector<8x1xf32>
    tpu.vector_store %arg5[%c0_52, %c38], %92 {strides = array<i32>} : memref<8x128xf32, #tpu.memory_space<vmem>>, vector<8x1xf32>,
    %c1 = arith.constant 1 : index
    %c0_53 = arith.constant 0 : index
    %c0_54 = arith.constant 0 : index
    %94 = vector.load %arg1[%c1, %c0_53, %c0_54] : memref<4x128x33xf32, #tpu.memory_space<vmem>>, vector<1x128x33xf32>
    %95 = vector.shape_cast %94 : vector<1x128x33xf32> to vector<128x33xf32>
    %c1_55 = arith.constant 1 : index
    %c0_56 = arith.constant 0 : index
    %c0_57 = arith.constant 0 : index
    %96 = vector.load %arg2[%c1_55, %c0_56, %c0_57] : memref<4x33x33xf32, #tpu.memory_space<vmem>>, vector<1x33x33xf32>
    %97 = vector.shape_cast %96 : vector<1x33x33xf32> to vector<33x33xf32>
    %c1_58 = arith.constant 1 : index
    %c0_59 = arith.constant 0 : index
    %c0_60 = arith.constant 0 : index
    %98 = vector.load %arg3[%c1_58, %c0_59, %c0_60] : memref<4x33x33xf32, #tpu.memory_space<vmem>>, vector<1x33x33xf32>
    %99 = vector.shape_cast %98 : vector<1x33x33xf32> to vector<33x33xf32>
    %c1_61 = arith.constant 1 : index
    %c0_62 = arith.constant 0 : index
    %c0_63 = arith.constant 0 : index
    %100 = vector.load %arg4[%c1_61, %c0_62, %c0_63] : memref<4x33x8xf32, #tpu.memory_space<vmem>>, vector<1x33x8xf32>
    %101 = vector.shape_cast %100 : vector<1x33x8xf32> to vector<33x8xf32>
    %c0_64 = arith.constant 0 : index
    %c0_65 = arith.constant 0 : index
    %102 = vector.load %arg6[%c0_64, %c0_65] : memref<8x128xf32, #tpu.memory_space<vmem>>, vector<8x128xf32>
    %cst_66 = arith.constant dense<0.000000e+00> : vector<8x33xf32>
    %103 = tpu.matmul %102, %95, %cst_66 {dimension_numbers = #tpu.dot_dimension_numbers<[1], [0], [0], [1], [0, 0, 1, 1], [], []>} : vector<8x128xf32>, vector<128x33xf32>, vector<8x33xf32> -> vector<8x33xf32>
    %104 = vector.extract_strided_slice %95 {offsets = [17, 0], sizes = [1, 33], strides = [1, 1]} : vector<128x33xf32> to vector<1x33xf32>
    %105 = vector.broadcast %90 : vector<8x1xf32> to vector<8x33xf32>
    %106 = vector.broadcast %104 : vector<1x33xf32> to vector<8x33xf32>
    %107 = arith.mulf %105, %106 : vector<8x33xf32>
    %108 = arith.addf %103, %107 : vector<8x33xf32>
    %cst_67 = arith.constant 0.000000e+00 : f32
    %109 = vector.broadcast %cst_67 : f32 to vector<8x33xf32>
    %110 = arith.cmpf ogt, %108, %109 : vector<8x33xf32>
    %cst_68 = arith.constant 0.229166672 : f32
    %111 = vector.broadcast %cst_68 : f32 to vector<8x33xf32>
    %112 = arith.mulf %111, %108 : vector<8x33xf32>
    %113 = arith.select %110, %108, %112 : vector<8x33xi1>, vector<8x33xf32>
    %c0_69 = arith.constant 0 : index
    %c17 = arith.constant 17 : index
    %114 = vector.load %arg6[%c0_69, %c17] : memref<8x128xf32, #tpu.memory_space<vmem>>, vector<8x1xf32>
    tpu.vector_store %arg6[%c0_69, %c17], %90 {strides = array<i32>} : memref<8x128xf32, #tpu.memory_space<vmem>>, vector<8x1xf32>,
    %cst_70 = arith.constant dense<0.000000e+00> : vector<8x33xf32>
    %115 = tpu.matmul %113, %97, %cst_70 {dimension_numbers = #tpu.dot_dimension_numbers<[1], [0], [0], [1], [0, 0, 1, 1], [], []>} : vector<8x33xf32>, vector<33x33xf32>, vector<8x33xf32> -> vector<8x33xf32>
    %cst_71 = arith.constant 0.000000e+00 : f32
    %116 = vector.broadcast %cst_71 : f32 to vector<8x33xf32>
    %117 = arith.cmpf ogt, %115, %116 : vector<8x33xf32>
    %cst_72 = arith.constant 0.229166672 : f32
    %118 = vector.broadcast %cst_72 : f32 to vector<8x33xf32>
    %119 = arith.mulf %118, %115 : vector<8x33xf32>
    %120 = arith.select %117, %115, %119 : vector<8x33xi1>, vector<8x33xf32>
    %cst_73 = arith.constant dense<0.000000e+00> : vector<8x33xf32>
    %121 = tpu.matmul %120, %99, %cst_73 {dimension_numbers = #tpu.dot_dimension_numbers<[1], [0], [0], [1], [0, 0, 1, 1], [], []>} : vector<8x33xf32>, vector<33x33xf32>, vector<8x33xf32> -> vector<8x33xf32>
    %cst_74 = arith.constant 0.000000e+00 : f32
    %122 = vector.broadcast %cst_74 : f32 to vector<8x33xf32>
    %123 = arith.cmpf ogt, %121, %122 : vector<8x33xf32>
    %cst_75 = arith.constant 0.229166672 : f32
    %124 = vector.broadcast %cst_75 : f32 to vector<8x33xf32>
    %125 = arith.mulf %124, %121 : vector<8x33xf32>
    %126 = arith.select %123, %121, %125 : vector<8x33xi1>, vector<8x33xf32>
    %cst_76 = arith.constant dense<0.000000e+00> : vector<8x8xf32>
    %127 = tpu.matmul %126, %101, %cst_76 {dimension_numbers = #tpu.dot_dimension_numbers<[1], [0], [0], [1], [0, 0, 1, 1], [], []>} : vector<8x33xf32>, vector<33x8xf32>, vector<8x8xf32> -> vector<8x8xf32>
    %cst_77 = arith.constant 0.000000e+00 : f32
    %128 = vector.broadcast %cst_77 : f32 to vector<8x8xf32>
    %129 = arith.cmpf ogt, %127, %128 : vector<8x8xf32>
    %cst_78 = arith.constant 0.229166672 : f32
    %130 = vector.broadcast %cst_78 : f32 to vector<8x8xf32>
    %131 = arith.mulf %130, %127 : vector<8x8xf32>
    %132 = arith.select %129, %127, %131 : vector<8x8xi1>, vector<8x8xf32>
    %cst_79 = arith.constant dense<0xFF800000> : vector<8xf32>
    %133 = vector.multi_reduction <maximumf>, %132, %cst_79 [1] : vector<8x8xf32> to vector<8xf32>
    %134 = vector.shape_cast %133 : vector<8xf32> to vector<8x1xf32>
    %135 = vector.broadcast %134 : vector<8x1xf32> to vector<8x8xf32>
    %136 = arith.subf %132, %135 : vector<8x8xf32>
    %137 = math.exp %136 : vector<8x8xf32>
    %cst_80 = arith.constant dense<0.000000e+00> : vector<8xf32>
    %138 = vector.multi_reduction <add>, %137, %cst_80 [1] : vector<8x8xf32> to vector<8xf32>
    %139 = vector.shape_cast %138 : vector<8xf32> to vector<8x1xf32>
    %140 = tpu.reciprocal %139 {approx = true} : vector<8x1xf32> -> vector<8x1xf32>
    %141 = vector.broadcast %140 : vector<8x1xf32> to vector<8x8xf32>
    %142 = arith.mulf %137, %141 : vector<8x8xf32>
    %c0_81 = arith.constant 0 : index
    %c8_82 = arith.constant 8 : index
    %143 = vector.load %arg5[%c0_81, %c8_82] : memref<8x128xf32, #tpu.memory_space<vmem>>, vector<8x8xf32>
    tpu.vector_store %arg5[%c0_81, %c8_82], %142 {strides = array<i32>} : memref<8x128xf32, #tpu.memory_space<vmem>>, vector<8x8xf32>,
    %c0_83 = arith.constant 0 : index
    %c18 = arith.constant 18 : index
    %144 = vector.load %arg6[%c0_83, %c18] : memref<8x128xf32, #tpu.memory_space<vmem>>, vector<8x8xf32>
    tpu.vector_store %arg6[%c0_83, %c18], %142 {strides = array<i32>} : memref<8x128xf32, #tpu.memory_space<vmem>>, vector<8x8xf32>,
    %cst_84 = arith.constant dense<0xFF800000> : vector<8xf32>
    %145 = vector.multi_reduction <maximumf>, %142, %cst_84 [1] : vector<8x8xf32> to vector<8xf32>
    %146 = vector.shape_cast %145 : vector<8xf32> to vector<8x1xf32>
    %147 = tpu.iota {dimensions = array<i32: 1>} : vector<8x8xi32>
    %148 = vector.broadcast %146 : vector<8x1xf32> to vector<8x8xf32>
    %149 = arith.cmpf oeq, %142, %148 : vector<8x8xf32>
    %c8_i32_85 = arith.constant 8 : i32
    %150 = vector.broadcast %c8_i32_85 : i32 to vector<8x8xi32>
    %151 = arith.select %149, %147, %150 : vector<8x8xi1>, vector<8x8xi32>
    %cst_86 = arith.constant dense<2147483647> : vector<8xi32>
    %152 = vector.multi_reduction <minsi>, %151, %cst_86 [1] : vector<8x8xi32> to vector<8xi32>
    %153 = vector.shape_cast %152 : vector<8xi32> to vector<8x1xi32>
    %154 = vector.broadcast %153 : vector<8x1xi32> to vector<8x8xi32>
    %155 = arith.cmpi eq, %1, %154 : vector<8x8xi32>
    %cst_87 = arith.constant 0.000000e+00 : f32
    %156 = vector.broadcast %cst_87 : f32 to vector<8x8xf32>
    %157 = arith.select %155, %0, %156 : vector<8x8xi1>, vector<8x8xf32>
    %cst_88 = arith.constant dense<0.000000e+00> : vector<8xf32>
    %158 = vector.multi_reduction <add>, %157, %cst_88 [1] : vector<8x8xf32> to vector<8xf32>
    %159 = vector.shape_cast %158 : vector<8xf32> to vector<8x1xf32>
    %c0_89 = arith.constant 0 : index
    %c34 = arith.constant 34 : index
    %160 = vector.load %arg5[%c0_89, %c34] : memref<8x128xf32, #tpu.memory_space<vmem>>, vector<8x1xf32>
    tpu.vector_store %arg5[%c0_89, %c34], %159 {strides = array<i32>} : memref<8x128xf32, #tpu.memory_space<vmem>>, vector<8x1xf32>,
    %161 = arith.sitofp %153 : vector<8x1xi32> to vector<8x1xf32>
    %c0_90 = arith.constant 0 : index
    %c39 = arith.constant 39 : index
    %162 = vector.load %arg5[%c0_90, %c39] : memref<8x128xf32, #tpu.memory_space<vmem>>, vector<8x1xf32>
    tpu.vector_store %arg5[%c0_90, %c39], %161 {strides = array<i32>} : memref<8x128xf32, #tpu.memory_space<vmem>>, vector<8x1xf32>,
    %c2 = arith.constant 2 : index
    %c0_91 = arith.constant 0 : index
    %c0_92 = arith.constant 0 : index
    %163 = vector.load %arg1[%c2, %c0_91, %c0_92] : memref<4x128x33xf32, #tpu.memory_space<vmem>>, vector<1x128x33xf32>
    %164 = vector.shape_cast %163 : vector<1x128x33xf32> to vector<128x33xf32>
    %c2_93 = arith.constant 2 : index
    %c0_94 = arith.constant 0 : index
    %c0_95 = arith.constant 0 : index
    %165 = vector.load %arg2[%c2_93, %c0_94, %c0_95] : memref<4x33x33xf32, #tpu.memory_space<vmem>>, vector<1x33x33xf32>
    %166 = vector.shape_cast %165 : vector<1x33x33xf32> to vector<33x33xf32>
    %c2_96 = arith.constant 2 : index
    %c0_97 = arith.constant 0 : index
    %c0_98 = arith.constant 0 : index
    %167 = vector.load %arg3[%c2_96, %c0_97, %c0_98] : memref<4x33x33xf32, #tpu.memory_space<vmem>>, vector<1x33x33xf32>
    %168 = vector.shape_cast %167 : vector<1x33x33xf32> to vector<33x33xf32>
    %c2_99 = arith.constant 2 : index
    %c0_100 = arith.constant 0 : index
    %c0_101 = arith.constant 0 : index
    %169 = vector.load %arg4[%c2_99, %c0_100, %c0_101] : memref<4x33x8xf32, #tpu.memory_space<vmem>>, vector<1x33x8xf32>
    %170 = vector.shape_cast %169 : vector<1x33x8xf32> to vector<33x8xf32>
    %c0_102 = arith.constant 0 : index
    %c0_103 = arith.constant 0 : index
    %171 = vector.load %arg6[%c0_102, %c0_103] : memref<8x128xf32, #tpu.memory_space<vmem>>, vector<8x128xf32>
    %cst_104 = arith.constant dense<0.000000e+00> : vector<8x33xf32>
    %172 = tpu.matmul %171, %164, %cst_104 {dimension_numbers = #tpu.dot_dimension_numbers<[1], [0], [0], [1], [0, 0, 1, 1], [], []>} : vector<8x128xf32>, vector<128x33xf32>, vector<8x33xf32> -> vector<8x33xf32>
    %173 = vector.extract_strided_slice %164 {offsets = [26, 0], sizes = [1, 33], strides = [1, 1]} : vector<128x33xf32> to vector<1x33xf32>
    %174 = vector.broadcast %159 : vector<8x1xf32> to vector<8x33xf32>
    %175 = vector.broadcast %173 : vector<1x33xf32> to vector<8x33xf32>
    %176 = arith.mulf %174, %175 : vector<8x33xf32>
    %177 = arith.addf %172, %176 : vector<8x33xf32>
    %cst_105 = arith.constant 0.000000e+00 : f32
    %178 = vector.broadcast %cst_105 : f32 to vector<8x33xf32>
    %179 = arith.cmpf ogt, %177, %178 : vector<8x33xf32>
    %cst_106 = arith.constant 0.229166672 : f32
    %180 = vector.broadcast %cst_106 : f32 to vector<8x33xf32>
    %181 = arith.mulf %180, %177 : vector<8x33xf32>
    %182 = arith.select %179, %177, %181 : vector<8x33xi1>, vector<8x33xf32>
    %c0_107 = arith.constant 0 : index
    %c26 = arith.constant 26 : index
    %183 = vector.load %arg6[%c0_107, %c26] : memref<8x128xf32, #tpu.memory_space<vmem>>, vector<8x1xf32>
    tpu.vector_store %arg6[%c0_107, %c26], %159 {strides = array<i32>} : memref<8x128xf32, #tpu.memory_space<vmem>>, vector<8x1xf32>,
    %cst_108 = arith.constant dense<0.000000e+00> : vector<8x33xf32>
    %184 = tpu.matmul %182, %166, %cst_108 {dimension_numbers = #tpu.dot_dimension_numbers<[1], [0], [0], [1], [0, 0, 1, 1], [], []>} : vector<8x33xf32>, vector<33x33xf32>, vector<8x33xf32> -> vector<8x33xf32>
    %cst_109 = arith.constant 0.000000e+00 : f32
    %185 = vector.broadcast %cst_109 : f32 to vector<8x33xf32>
    %186 = arith.cmpf ogt, %184, %185 : vector<8x33xf32>
    %cst_110 = arith.constant 0.229166672 : f32
    %187 = vector.broadcast %cst_110 : f32 to vector<8x33xf32>
    %188 = arith.mulf %187, %184 : vector<8x33xf32>
    %189 = arith.select %186, %184, %188 : vector<8x33xi1>, vector<8x33xf32>
    %cst_111 = arith.constant dense<0.000000e+00> : vector<8x33xf32>
    %190 = tpu.matmul %189, %168, %cst_111 {dimension_numbers = #tpu.dot_dimension_numbers<[1], [0], [0], [1], [0, 0, 1, 1], [], []>} : vector<8x33xf32>, vector<33x33xf32>, vector<8x33xf32> -> vector<8x33xf32>
    %cst_112 = arith.constant 0.000000e+00 : f32
    %191 = vector.broadcast %cst_112 : f32 to vector<8x33xf32>
    %192 = arith.cmpf ogt, %190, %191 : vector<8x33xf32>
    %cst_113 = arith.constant 0.229166672 : f32
    %193 = vector.broadcast %cst_113 : f32 to vector<8x33xf32>
    %194 = arith.mulf %193, %190 : vector<8x33xf32>
    %195 = arith.select %192, %190, %194 : vector<8x33xi1>, vector<8x33xf32>
    %cst_114 = arith.constant dense<0.000000e+00> : vector<8x8xf32>
    %196 = tpu.matmul %195, %170, %cst_114 {dimension_numbers = #tpu.dot_dimension_numbers<[1], [0], [0], [1], [0, 0, 1, 1], [], []>} : vector<8x33xf32>, vector<33x8xf32>, vector<8x8xf32> -> vector<8x8xf32>
    %cst_115 = arith.constant 0.000000e+00 : f32
    %197 = vector.broadcast %cst_115 : f32 to vector<8x8xf32>
    %198 = arith.cmpf ogt, %196, %197 : vector<8x8xf32>
    %cst_116 = arith.constant 0.229166672 : f32
    %199 = vector.broadcast %cst_116 : f32 to vector<8x8xf32>
    %200 = arith.mulf %199, %196 : vector<8x8xf32>
    %201 = arith.select %198, %196, %200 : vector<8x8xi1>, vector<8x8xf32>
    %cst_117 = arith.constant dense<0xFF800000> : vector<8xf32>
    %202 = vector.multi_reduction <maximumf>, %201, %cst_117 [1] : vector<8x8xf32> to vector<8xf32>
    %203 = vector.shape_cast %202 : vector<8xf32> to vector<8x1xf32>
    %204 = vector.broadcast %203 : vector<8x1xf32> to vector<8x8xf32>
    %205 = arith.subf %201, %204 : vector<8x8xf32>
    %206 = math.exp %205 : vector<8x8xf32>
    %cst_118 = arith.constant dense<0.000000e+00> : vector<8xf32>
    %207 = vector.multi_reduction <add>, %206, %cst_118 [1] : vector<8x8xf32> to vector<8xf32>
    %208 = vector.shape_cast %207 : vector<8xf32> to vector<8x1xf32>
    %209 = tpu.reciprocal %208 {approx = true} : vector<8x1xf32> -> vector<8x1xf32>
    %210 = vector.broadcast %209 : vector<8x1xf32> to vector<8x8xf32>
    %211 = arith.mulf %206, %210 : vector<8x8xf32>
    %c0_119 = arith.constant 0 : index
    %c16 = arith.constant 16 : index
    %212 = vector.load %arg5[%c0_119, %c16] : memref<8x128xf32, #tpu.memory_space<vmem>>, vector<8x8xf32>
    tpu.vector_store %arg5[%c0_119, %c16], %211 {strides = array<i32>} : memref<8x128xf32, #tpu.memory_space<vmem>>, vector<8x8xf32>,
    %c0_120 = arith.constant 0 : index
    %c27 = arith.constant 27 : index
    %213 = vector.load %arg6[%c0_120, %c27] : memref<8x128xf32, #tpu.memory_space<vmem>>, vector<8x8xf32>
    tpu.vector_store %arg6[%c0_120, %c27], %211 {strides = array<i32>} : memref<8x128xf32, #tpu.memory_space<vmem>>, vector<8x8xf32>,
    %cst_121 = arith.constant dense<0xFF800000> : vector<8xf32>
    %214 = vector.multi_reduction <maximumf>, %211, %cst_121 [1] : vector<8x8xf32> to vector<8xf32>
    %215 = vector.shape_cast %214 : vector<8xf32> to vector<8x1xf32>
    %216 = tpu.iota {dimensions = array<i32: 1>} : vector<8x8xi32>
    %217 = vector.broadcast %215 : vector<8x1xf32> to vector<8x8xf32>
    %218 = arith.cmpf oeq, %211, %217 : vector<8x8xf32>
    %c8_i32_122 = arith.constant 8 : i32
    %219 = vector.broadcast %c8_i32_122 : i32 to vector<8x8xi32>
    %220 = arith.select %218, %216, %219 : vector<8x8xi1>, vector<8x8xi32>
    %cst_123 = arith.constant dense<2147483647> : vector<8xi32>
    %221 = vector.multi_reduction <minsi>, %220, %cst_123 [1] : vector<8x8xi32> to vector<8xi32>
    %222 = vector.shape_cast %221 : vector<8xi32> to vector<8x1xi32>
    %223 = vector.broadcast %222 : vector<8x1xi32> to vector<8x8xi32>
    %224 = arith.cmpi eq, %1, %223 : vector<8x8xi32>
    %cst_124 = arith.constant 0.000000e+00 : f32
    %225 = vector.broadcast %cst_124 : f32 to vector<8x8xf32>
    %226 = arith.select %224, %0, %225 : vector<8x8xi1>, vector<8x8xf32>
    %cst_125 = arith.constant dense<0.000000e+00> : vector<8xf32>
    %227 = vector.multi_reduction <add>, %226, %cst_125 [1] : vector<8x8xf32> to vector<8xf32>
    %228 = vector.shape_cast %227 : vector<8xf32> to vector<8x1xf32>
    %c0_126 = arith.constant 0 : index
    %c35 = arith.constant 35 : index
    %229 = vector.load %arg5[%c0_126, %c35] : memref<8x128xf32, #tpu.memory_space<vmem>>, vector<8x1xf32>
    tpu.vector_store %arg5[%c0_126, %c35], %228 {strides = array<i32>} : memref<8x128xf32, #tpu.memory_space<vmem>>, vector<8x1xf32>,
    %230 = arith.sitofp %222 : vector<8x1xi32> to vector<8x1xf32>
    %c0_127 = arith.constant 0 : index
    %c40 = arith.constant 40 : index
    %231 = vector.load %arg5[%c0_127, %c40] : memref<8x128xf32, #tpu.memory_space<vmem>>, vector<8x1xf32>
    tpu.vector_store %arg5[%c0_127, %c40], %230 {strides = array<i32>} : memref<8x128xf32, #tpu.memory_space<vmem>>, vector<8x1xf32>,
    %c3 = arith.constant 3 : index
    %c0_128 = arith.constant 0 : index
    %c0_129 = arith.constant 0 : index
    %232 = vector.load %arg1[%c3, %c0_128, %c0_129] : memref<4x128x33xf32, #tpu.memory_space<vmem>>, vector<1x128x33xf32>
    %233 = vector.shape_cast %232 : vector<1x128x33xf32> to vector<128x33xf32>
    %c3_130 = arith.constant 3 : index
    %c0_131 = arith.constant 0 : index
    %c0_132 = arith.constant 0 : index
    %234 = vector.load %arg2[%c3_130, %c0_131, %c0_132] : memref<4x33x33xf32, #tpu.memory_space<vmem>>, vector<1x33x33xf32>
    %235 = vector.shape_cast %234 : vector<1x33x33xf32> to vector<33x33xf32>
    %c3_133 = arith.constant 3 : index
    %c0_134 = arith.constant 0 : index
    %c0_135 = arith.constant 0 : index
    %236 = vector.load %arg3[%c3_133, %c0_134, %c0_135] : memref<4x33x33xf32, #tpu.memory_space<vmem>>, vector<1x33x33xf32>
    %237 = vector.shape_cast %236 : vector<1x33x33xf32> to vector<33x33xf32>
    %c3_136 = arith.constant 3 : index
    %c0_137 = arith.constant 0 : index
    %c0_138 = arith.constant 0 : index
    %238 = vector.load %arg4[%c3_136, %c0_137, %c0_138] : memref<4x33x8xf32, #tpu.memory_space<vmem>>, vector<1x33x8xf32>
    %239 = vector.shape_cast %238 : vector<1x33x8xf32> to vector<33x8xf32>
    %c0_139 = arith.constant 0 : index
    %c0_140 = arith.constant 0 : index
    %240 = vector.load %arg6[%c0_139, %c0_140] : memref<8x128xf32, #tpu.memory_space<vmem>>, vector<8x128xf32>
    %cst_141 = arith.constant dense<0.000000e+00> : vector<8x33xf32>
    %241 = tpu.matmul %240, %233, %cst_141 {dimension_numbers = #tpu.dot_dimension_numbers<[1], [0], [0], [1], [0, 0, 1, 1], [], []>} : vector<8x128xf32>, vector<128x33xf32>, vector<8x33xf32> -> vector<8x33xf32>
    %242 = vector.extract_strided_slice %233 {offsets = [35, 0], sizes = [1, 33], strides = [1, 1]} : vector<128x33xf32> to vector<1x33xf32>
    %243 = vector.broadcast %228 : vector<8x1xf32> to vector<8x33xf32>
    %244 = vector.broadcast %242 : vector<1x33xf32> to vector<8x33xf32>
    %245 = arith.mulf %243, %244 : vector<8x33xf32>
    %246 = arith.addf %241, %245 : vector<8x33xf32>
    %cst_142 = arith.constant 0.000000e+00 : f32
    %247 = vector.broadcast %cst_142 : f32 to vector<8x33xf32>
    %248 = arith.cmpf ogt, %246, %247 : vector<8x33xf32>
    %cst_143 = arith.constant 0.229166672 : f32
    %249 = vector.broadcast %cst_143 : f32 to vector<8x33xf32>
    %250 = arith.mulf %249, %246 : vector<8x33xf32>
    %251 = arith.select %248, %246, %250 : vector<8x33xi1>, vector<8x33xf32>
    %cst_144 = arith.constant dense<0.000000e+00> : vector<8x33xf32>
    %252 = tpu.matmul %251, %235, %cst_144 {dimension_numbers = #tpu.dot_dimension_numbers<[1], [0], [0], [1], [0, 0, 1, 1], [], []>} : vector<8x33xf32>, vector<33x33xf32>, vector<8x33xf32> -> vector<8x33xf32>
    %cst_145 = arith.constant 0.000000e+00 : f32
    %253 = vector.broadcast %cst_145 : f32 to vector<8x33xf32>
    %254 = arith.cmpf ogt, %252, %253 : vector<8x33xf32>
    %cst_146 = arith.constant 0.229166672 : f32
    %255 = vector.broadcast %cst_146 : f32 to vector<8x33xf32>
    %256 = arith.mulf %255, %252 : vector<8x33xf32>
    %257 = arith.select %254, %252, %256 : vector<8x33xi1>, vector<8x33xf32>
    %cst_147 = arith.constant dense<0.000000e+00> : vector<8x33xf32>
    %258 = tpu.matmul %257, %237, %cst_147 {dimension_numbers = #tpu.dot_dimension_numbers<[1], [0], [0], [1], [0, 0, 1, 1], [], []>} : vector<8x33xf32>, vector<33x33xf32>, vector<8x33xf32> -> vector<8x33xf32>
    %cst_148 = arith.constant 0.000000e+00 : f32
    %259 = vector.broadcast %cst_148 : f32 to vector<8x33xf32>
    %260 = arith.cmpf ogt, %258, %259 : vector<8x33xf32>
    %cst_149 = arith.constant 0.229166672 : f32
    %261 = vector.broadcast %cst_149 : f32 to vector<8x33xf32>
    %262 = arith.mulf %261, %258 : vector<8x33xf32>
    %263 = arith.select %260, %258, %262 : vector<8x33xi1>, vector<8x33xf32>
    %cst_150 = arith.constant dense<0.000000e+00> : vector<8x8xf32>
    %264 = tpu.matmul %263, %239, %cst_150 {dimension_numbers = #tpu.dot_dimension_numbers<[1], [0], [0], [1], [0, 0, 1, 1], [], []>} : vector<8x33xf32>, vector<33x8xf32>, vector<8x8xf32> -> vector<8x8xf32>
    %cst_151 = arith.constant 0.000000e+00 : f32
    %265 = vector.broadcast %cst_151 : f32 to vector<8x8xf32>
    %266 = arith.cmpf ogt, %264, %265 : vector<8x8xf32>
    %cst_152 = arith.constant 0.229166672 : f32
    %267 = vector.broadcast %cst_152 : f32 to vector<8x8xf32>
    %268 = arith.mulf %267, %264 : vector<8x8xf32>
    %269 = arith.select %266, %264, %268 : vector<8x8xi1>, vector<8x8xf32>
    %cst_153 = arith.constant dense<0xFF800000> : vector<8xf32>
    %270 = vector.multi_reduction <maximumf>, %269, %cst_153 [1] : vector<8x8xf32> to vector<8xf32>
    %271 = vector.shape_cast %270 : vector<8xf32> to vector<8x1xf32>
    %272 = vector.broadcast %271 : vector<8x1xf32> to vector<8x8xf32>
    %273 = arith.subf %269, %272 : vector<8x8xf32>
    %274 = math.exp %273 : vector<8x8xf32>
    %cst_154 = arith.constant dense<0.000000e+00> : vector<8xf32>
    %275 = vector.multi_reduction <add>, %274, %cst_154 [1] : vector<8x8xf32> to vector<8xf32>
    %276 = vector.shape_cast %275 : vector<8xf32> to vector<8x1xf32>
    %277 = tpu.reciprocal %276 {approx = true} : vector<8x1xf32> -> vector<8x1xf32>
    %278 = vector.broadcast %277 : vector<8x1xf32> to vector<8x8xf32>
    %279 = arith.mulf %274, %278 : vector<8x8xf32>
    %c0_155 = arith.constant 0 : index
    %c24 = arith.constant 24 : index
    %280 = vector.load %arg5[%c0_155, %c24] : memref<8x128xf32, #tpu.memory_space<vmem>>, vector<8x8xf32>
    tpu.vector_store %arg5[%c0_155, %c24], %279 {strides = array<i32>} : memref<8x128xf32, #tpu.memory_space<vmem>>, vector<8x8xf32>,
    %cst_156 = arith.constant dense<0xFF800000> : vector<8xf32>
    %281 = vector.multi_reduction <maximumf>, %279, %cst_156 [1] : vector<8x8xf32> to vector<8xf32>
    %282 = vector.shape_cast %281 : vector<8xf32> to vector<8x1xf32>
    %283 = tpu.iota {dimensions = array<i32: 1>} : vector<8x8xi32>
    %284 = vector.broadcast %282 : vector<8x1xf32> to vector<8x8xf32>
    %285 = arith.cmpf oeq, %279, %284 : vector<8x8xf32>
    %c8_i32_157 = arith.constant 8 : i32
    %286 = vector.broadcast %c8_i32_157 : i32 to vector<8x8xi32>
    %287 = arith.select %285, %283, %286 : vector<8x8xi1>, vector<8x8xi32>
    %cst_158 = arith.constant dense<2147483647> : vector<8xi32>
    %288 = vector.multi_reduction <minsi>, %287, %cst_158 [1] : vector<8x8xi32> to vector<8xi32>
    %289 = vector.shape_cast %288 : vector<8xi32> to vector<8x1xi32>
    %290 = vector.broadcast %289 : vector<8x1xi32> to vector<8x8xi32>
    %291 = arith.cmpi eq, %1, %290 : vector<8x8xi32>
    %cst_159 = arith.constant 0.000000e+00 : f32
    %292 = vector.broadcast %cst_159 : f32 to vector<8x8xf32>
    %293 = arith.select %291, %0, %292 : vector<8x8xi1>, vector<8x8xf32>
    %cst_160 = arith.constant dense<0.000000e+00> : vector<8xf32>
    %294 = vector.multi_reduction <add>, %293, %cst_160 [1] : vector<8x8xf32> to vector<8xf32>
    %295 = vector.shape_cast %294 : vector<8xf32> to vector<8x1xf32>
    %c0_161 = arith.constant 0 : index
    %c36 = arith.constant 36 : index
    %296 = vector.load %arg5[%c0_161, %c36] : memref<8x128xf32, #tpu.memory_space<vmem>>, vector<8x1xf32>
    tpu.vector_store %arg5[%c0_161, %c36], %295 {strides = array<i32>} : memref<8x128xf32, #tpu.memory_space<vmem>>, vector<8x1xf32>,
    %297 = arith.sitofp %289 : vector<8x1xi32> to vector<8x1xf32>
    %c0_162 = arith.constant 0 : index
    %c41 = arith.constant 41 : index
    %298 = vector.load %arg5[%c0_162, %c41] : memref<8x128xf32, #tpu.memory_space<vmem>>, vector<8x1xf32>
    tpu.vector_store %arg5[%c0_162, %c41], %297 {strides = array<i32>} : memref<8x128xf32, #tpu.memory_space<vmem>>, vector<8x1xf32>,
    return
  }
}

</mosaic_0001>

<llo_original>
// kernel: _fused_forward.1
$region0: #{_fused_forward.1}
  #allocation0 [shape = 'u32[]', space=smem, size = 0x4, offset = 0x4, fixed_abs, tag = 'smem constant byte address 0x4 - core index']
  #allocation1 [shape = 'u32[144,128]{1,0:T(1,128)}', space=vmem, size = 0x12000, scoped, tag = 'internal scratch']
  #allocation2 [shape = 'f32[8,128]{1,0:T(8,128)}', space=vmem, size = 0x1000, scoped, tag = 'scratch operand']
  %s0 = inlined_call_operand.vmem [shape: f32[8,128], index: 0, kind: input, shape index: {}]
  %s1 = inlined_call_operand.vmem [shape: f32[4,128,33], index: 1, kind: input, shape index: {}]
  %s2 = inlined_call_operand.vmem [shape: f32[4,33,33], index: 2, kind: input, shape index: {}]
  %s3 = inlined_call_operand.vmem [shape: f32[4,33,33], index: 3, kind: input, shape index: {}]
  %s4 = inlined_call_operand.vmem [shape: f32[4,33,8], index: 4, kind: input, shape index: {}]
  %s5 = inlined_call_operand.vmem [shape: f32[8,128], index: 5, kind: output, shape index: {}]
  %s6 = sld [smem:[#allocation0]]
  $region30: #{_fused_forward.1} parent=0
    _
  %s8 = ssub.s32 1, %s6
  %s9 = scalar_select 0, %s8, %s6
  // Predicated region
  $region2: #{_fused_forward.1} parent=0 // pred_check
    _
  $region3: #{_fused_forward.1} parent=0 // pred_check_branch
    %11 = sbr.rel (0) target = $region5
  $region4: #{_fused_forward.1} parent=0 // pred_region
    _
  $region5: #{_fused_forward.1} parent=0 // pred_fallthru
    _
  // Predicated region
  $region6: #{_fused_forward.1} parent=0 // pred_check
    _
  $region7: #{_fused_forward.1} parent=0 // pred_check_branch
    %13 = sbr.rel (0) target = $region9
  $region8: #{_fused_forward.1} parent=0 // pred_region
    _
  $region9: #{_fused_forward.1} parent=0 // pred_fallthru
    _
  // Predicated region
  $region10: #{_fused_forward.1} parent=0 // pred_check
    _
  $region11: #{_fused_forward.1} parent=0 // pred_check_branch
    %15 = sbr.rel (0) target = $region13
  $region12: #{_fused_forward.1} parent=0 // pred_region
    _
  $region13: #{_fused_forward.1} parent=0 // pred_fallthru
    _
  // Predicated region
  $region14: #{_fused_forward.1} parent=0 // pred_check
    _
  $region15: #{_fused_forward.1} parent=0 // pred_check_branch
    %17 = sbr.rel (0) target = $region17
  $region16: #{_fused_forward.1} parent=0 // pred_region
    _
  $region17: #{_fused_forward.1} parent=0 // pred_fallthru
    _
  // Predicated region
  $region18: #{_fused_forward.1} parent=0 // pred_check
    _
  $region19: #{_fused_forward.1} parent=0 // pred_check_branch
    %19 = sbr.rel (0) target = $region21
  $region20: #{_fused_forward.1} parent=0 // pred_region
    _
  $region21: #{_fused_forward.1} parent=0 // pred_fallthru
    _
  %v20 = vld [vmem:[%s0] sm:$0xff]
  %v21 = vlaneseq
  %v22 = vand.u32 %v21, 127
  %23 = vst [vmem:[%s5] sm:$0xff] 0.0
  %v24 = vld [vmem:[%s0] sm:$0xff]
  %25 = vst [vmem:[#allocation2] sm:$0xff] %v24
  %v26 = vld [vmem:[%s0] sm:$0xff]
  %vm27 = vcmask 64512
  %v28 = vsel %vm27, %v26, -inf
  %29 = vmax.xlane.f32.xlu0 %v28
  %v30 = vpop.xlane.xlu0 %29
  %vm31 = vcmp.eq.f32.partialorder %v26, %v30
  %v32 = vsel %vm31, %v22, 8
  %v33 = vsel %vm27, %v32, 2147483647
  %v34 = vand.u32 %v33, 65535
  %v35 = vshra.s32 %v33, 16
  %v36 = vcvt.s32.f32 %v34
  %v37 = vcvt.s32.f32 %v35
  %38 = vmin.xlane.f32.xlu0 %v37
  %v39 = vpop.xlane.xlu0 %38
  %vm40 = vcmp.eq.f32.partialorder %v37, %v39
  %v41 = vsel %vm40, %v36, inf
  %42 = vmin.xlane.f32.xlu0 %v41
  %v43 = vpop.xlane.xlu0 %42
  %v44 = vcvt.f32.s32 %v43
  %v45 = vcvt.f32.s32 %v39
  %v46 = vshll.u32 %v45, 16
  %v47 = vadd.s32 %v46, %v44
  %vm48 = vcmp.eq.s32.totalorder %v22, %v47
  %50 = vrot.lane.b32.xlu0 %v20, 83
  %v51 = vpop.permute.xlu0 %50
  %v53 = vsel %vm48, %v51, 0.0
  %v54 = vsel %vm27, %v53, 0.0
  %55 = vadd.xlane.f32.xlu0 %v54
  %v56 = vpop.xlane.xlu0 %55
  %vm57 = vcmask 269568
  %58 = vst.msk [vmem:[%s5] sm:$0xff] %vm57, %v56
  %v59 = vcvt.s32.f32 %v47
  %vm60 = vcmask 310568
  %61 = vst.msk [vmem:[%s5] sm:$0xff] %vm60, %v59
  %v62 = vld [vmem:[%s1] sm:$0xff]
  %v63 = vld [vmem:[%s1 + $0x8] sm:$0xff]
  %v64 = vld [vmem:[%s1 + $0x10] sm:$0xff]
  %v65 = vld [vmem:[%s1 + $0x18] sm:$0xff]
  %v66 = vld [vmem:[%s1 + $0x20] sm:$0xff]
  %v67 = vld [vmem:[%s1 + $0x28] sm:$0xff]
  %v68 = vld [vmem:[%s1 + $0x30] sm:$0xff]
  %v69 = vld [vmem:[%s1 + $0x38] sm:$0xff]
  %v70 = vld [vmem:[%s1 + $0x40] sm:$0xff]
  %v71 = vld [vmem:[%s1 + $0x48] sm:$0xff]
  %v72 = vld [vmem:[%s1 + $0x50] sm:$0xff]
  %v73 = vld [vmem:[%s1 + $0x58] sm:$0xff]
  %v74 = vld [vmem:[%s1 + $0x60] sm:$0xff]
  %v75 = vld [vmem:[%s1 + $0x68] sm:$0xff]
  %v76 = vld [vmem:[%s1 + $0x70] sm:$0xff]
  %v77 = vld [vmem:[%s1 + $0x78] sm:$0xff]
  %v78 = vld [vmem:[%s2] sm:$0xff]
  %v79 = vld [vmem:[%s2 + $0x8] sm:$0xff]
  %v80 = vld [vmem:[%s2 + $0x10] sm:$0xff]
  %v81 = vld [vmem:[%s2 + $0x18] sm:$0xff]
  %v82 = vld [vmem:[%s2 + $0x20] sm:$0x1]
  %v83 = vld [vmem:[%s3] sm:$0xff]
  %v84 = vld [vmem:[%s3 + $0x8] sm:$0xff]
  %v85 = vld [vmem:[%s3 + $0x10] sm:$0xff]
  %v86 = vld [vmem:[%s3 + $0x18] sm:$0xff]
  %v87 = vld [vmem:[%s3 + $0x20] sm:$0x1]
  %v88 = vld [vmem:[%s4] sm:$0xff]
  %v89 = vld [vmem:[%s4 + $0x8] sm:$0xff]
  %v90 = vld [vmem:[%s4 + $0x10] sm:$0xff]
  %v91 = vld [vmem:[%s4 + $0x18] sm:$0xff]
  %v92 = vld [vmem:[%s4 + $0x20] sm:$0x1]
  %v93 = vld [vmem:[#allocation2] sm:$0xff]
  %v94 = vlaneseq
  %v95 = vshrl.u32 %v94, 7
  %v96 = vsub.s32 0, %v95
  %v97 = vrot.slane %v63, %v96
  %v98 = vmul.f32 %v56, %v97
  %99 = vmatprep.subr.mxu0 0.0
  %100 = vmatpush1.msra.mxu0 %v62
  %101 = vmatprep.subr.mxu0 0.0
  %102 = vmatpush1.msra.mxu0 %v63
  %103 = vmatprep.subr.mxu0 0.0
  %104 = vmatpush1.msra.mxu0 %v64
  %105 = vmatprep.subr.mxu0 0.0
  %106 = vmatpush1.msra.mxu0 %v65
  %107 = vmatprep.subr.mxu0 0.0
  %108 = vmatpush1.msra.mxu0 %v66
  %109 = vmatprep.subr.mxu0 0.0
  %110 = vmatpush1.msra.mxu0 %v67
  %111 = vmatprep.subr.mxu0 0.0
  %112 = vmatpush1.msra.mxu0 %v68
  %113 = vmatprep.subr.mxu0 0.0
  %114 = vmatpush1.msra.mxu0 %v69
  %115 = vmatprep.subr.mxu0 0.0
  %116 = vmatpush1.msra.mxu0 %v70
  %117 = vmatprep.subr.mxu0 0.0
  %118 = vmatpush1.msra.mxu0 %v71
  %119 = vmatprep.subr.mxu0 0.0
  %120 = vmatpush1.msra.mxu0 %v72
  %121 = vmatprep.subr.mxu0 0.0
  %122 = vmatpush1.msra.mxu0 %v73
  %123 = vmatprep.subr.mxu0 0.0
  %124 = vmatpush1.msra.mxu0 %v74
  %125 = vmatprep.subr.mxu0 0.0
  %126 = vmatpush1.msra.mxu0 %v75
  %127 = vmatprep.subr.mxu0 0.0
  %128 = vmatpush1.msra.mxu0 %v76
  %129 = vmatprep.subr.mxu0 0.0
  %130 = vmatpush1.msra.mxu0 %v77
  %131 = vmatprep.subr.mxu0 0.0
  %132 = vmatpush1.msra.mxu0 0.0
  %133 = vmatprep.subr.mxu0 0.0
  %134 = vmatpush1.msra.mxu0 0.0
  %135 = vmatprep.subr.mxu0 0.0
  %136 = vmatpush1.msra.mxu0 0.0
  %137 = vmatprep.subr.mxu0 0.0
  %138 = vmatpush1.msra.mxu0 0.0
  %139 = vmatprep.subr.mxu0 0.0
  %140 = vmatpush1.msra.mxu0 0.0
  %141 = vmatprep.subr.mxu0 0.0
  %142 = vmatpush1.msra.mxu0 0.0
  %143 = vmatprep.subr.mxu0 0.0
  %144 = vmatpush1.msra.mxu0 0.0
  %145 = vmatprep.subr.mxu0 0.0
  %146 = vmatpush1.msra.mxu0 0.0
  %147 = vmatprep.subr.mxu0 0.0
  %148 = vmatpush1.msra.mxu0 0.0
  %149 = vmatprep.subr.mxu0 0.0
  %150 = vmatpush1.msra.mxu0 0.0
  %151 = vmatprep.subr.mxu0 0.0
  %152 = vmatpush1.msra.mxu0 0.0
  %153 = vmatprep.subr.mxu0 0.0
  %154 = vmatpush1.msra.mxu0 0.0
  %155 = vmatprep.subr.mxu0 0.0
  %156 = vmatpush1.msra.mxu0 0.0
  %157 = vmatprep.subr.mxu0 0.0
  %158 = vmatpush1.msra.mxu0 0.0
  %159 = vmatprep.subr.mxu0 0.0
  %160 = vmatpush1.msra.mxu0 0.0
  %161 = vmatprep.subr.mxu0 0.0
  %162 = vmatpush1.msra.mxu0 0.0
  %163 = vmatprep.mubr.f32.mxu0 0.0
  %164 = vmatmul.mubr.f32.gmra.mrb[0].mxu0 %v93
  %v165 = vpop.f32.mrb[0].mxu0
  %v166 = vadd.f32 %v98, %v165
  %v167 = vpop.f32.mrb[0].mxu0
  %168 = vdwg.mxu0
  %vm169 = vcmp.gt.f32.partialorder %v166, 0.0
  %v170 = vmul.f32 %v166, 0.22916667
  %v171 = vsel %vm169, %v166, %v170
  %vm172 = vcmask 72768
  %173 = vst.msk [vmem:[#allocation2] sm:$0xff] %vm172, %v56
  %vm174 = vcmask 269312
  %v176 = vsel %vm174, %v171, 0
  %vm178 = vcmask 1040384
  %v180 = vsel %vm178, %v82, 0
  %182 = vmatprep.subr.mxu0 0.0
  %183 = vmatpush1.msra.mxu0 %v78
  %184 = vmatprep.subr.mxu0 0.0
  %185 = vmatpush1.msra.mxu0 %v79
  %186 = vmatprep.subr.mxu0 0.0
  %187 = vmatpush1.msra.mxu0 %v80
  %188 = vmatprep.subr.mxu0 0.0
  %189 = vmatpush1.msra.mxu0 %v81
  %190 = vmatprep.subr.mxu0 0.0
  %191 = vmatpush1.msra.mxu0 %v180
  %192 = vmatprep.subr.mxu0 0.0
  %193 = vmatpush1.msra.mxu0 0.0
  %194 = vmatprep.subr.mxu0 0.0
  %195 = vmatpush1.msra.mxu0 0.0
  %196 = vmatprep.subr.mxu0 0.0
  %197 = vmatpush1.msra.mxu0 0.0
  %198 = vmatprep.subr.mxu0 0.0
  %199 = vmatpush1.msra.mxu0 0.0
  %200 = vmatprep.subr.mxu0 0.0
  %201 = vmatpush1.msra.mxu0 0.0
  %202 = vmatprep.subr.mxu0 0.0
  %203 = vmatpush1.msra.mxu0 0.0
  %204 = vmatprep.subr.mxu0 0.0
  %205 = vmatpush1.msra.mxu0 0.0
  %206 = vmatprep.subr.mxu0 0.0
  %207 = vmatpush1.msra.mxu0 0.0
  %208 = vmatprep.subr.mxu0 0.0
  %209 = vmatpush1.msra.mxu0 0.0
  %210 = vmatprep.subr.mxu0 0.0
  %211 = vmatpush1.msra.mxu0 0.0
  %212 = vmatprep.subr.mxu0 0.0
  %213 = vmatpush1.msra.mxu0 0.0
  %214 = vmatprep.subr.mxu0 0.0
  %215 = vmatpush1.msra.mxu0 0.0
  %216 = vmatprep.subr.mxu0 0.0
  %217 = vmatpush1.msra.mxu0 0.0
  %218 = vmatprep.subr.mxu0 0.0
  %219 = vmatpush1.msra.mxu0 0.0
  %220 = vmatprep.subr.mxu0 0.0
  %221 = vmatpush1.msra.mxu0 0.0
  %222 = vmatprep.subr.mxu0 0.0
  %223 = vmatpush1.msra.mxu0 0.0
  %224 = vmatprep.subr.mxu0 0.0
  %225 = vmatpush1.msra.mxu0 0.0
  %226 = vmatprep.subr.mxu0 0.0
  %227 = vmatpush1.msra.mxu0 0.0
  %228 = vmatprep.subr.mxu0 0.0
  %229 = vmatpush1.msra.mxu0 0.0
  %230 = vmatprep.subr.mxu0 0.0
  %231 = vmatpush1.msra.mxu0 0.0
  %232 = vmatprep.subr.mxu0 0.0
  %233 = vmatpush1.msra.mxu0 0.0
  %234 = vmatprep.subr.mxu0 0.0
  %235 = vmatpush1.msra.mxu0 0.0
  %236 = vmatprep.subr.mxu0 0.0
  %237 = vmatpush1.msra.mxu0 0.0
  %238 = vmatprep.subr.mxu0 0.0
  %239 = vmatpush1.msra.mxu0 0.0
  %240 = vmatprep.subr.mxu0 0.0
  %241 = vmatpush1.msra.mxu0 0.0
  %242 = vmatprep.subr.mxu0 0.0
  %243 = vmatpush1.msra.mxu0 0.0
  %244 = vmatprep.subr.mxu0 0.0
  %245 = vmatpush1.msra.mxu0 0.0
  %246 = vmatprep.mubr.f32.mxu0 0.0
  %247 = vmatmul.mubr.f32.gmra.mrb[0].mxu0 %v176
  %v248 = vpop.f32.mrb[0].mxu0
  %v249 = vadd.f32 0.0, %v248
  %v250 = vpop.f32.mrb[0].mxu0
  %251 = vdwg.mxu0
  %vm252 = vcmp.gt.f32.partialorder %v249, 0.0
  %v253 = vmul.f32 %v249, 0.22916667
  %v254 = vsel %vm252, %v249, %v253
  %v256 = vsel %vm174, %v254, 0
  %v259 = vsel %vm178, %v87, 0
  %261 = vmatprep.subr.mxu0 0.0
  %262 = vmatpush1.msra.mxu0 %v83
  %263 = vmatprep.subr.mxu0 0.0
  %264 = vmatpush1.msra.mxu0 %v84
  %265 = vmatprep.subr.mxu0 0.0
  %266 = vmatpush1.msra.mxu0 %v85
  %267 = vmatprep.subr.mxu0 0.0
  %268 = vmatpush1.msra.mxu0 %v86
  %269 = vmatprep.subr.mxu0 0.0
  %270 = vmatpush1.msra.mxu0 %v259
  %271 = vmatprep.subr.mxu0 0.0
  %272 = vmatpush1.msra.mxu0 0.0
  %273 = vmatprep.subr.mxu0 0.0
  %274 = vmatpush1.msra.mxu0 0.0
  %275 = vmatprep.subr.mxu0 0.0
  %276 = vmatpush1.msra.mxu0 0.0
  %277 = vmatprep.subr.mxu0 0.0
  %278 = vmatpush1.msra.mxu0 0.0
  %279 = vmatprep.subr.mxu0 0.0
  %280 = vmatpush1.msra.mxu0 0.0
  %281 = vmatprep.subr.mxu0 0.0
  %282 = vmatpush1.msra.mxu0 0.0
  %283 = vmatprep.subr.mxu0 0.0
  %284 = vmatpush1.msra.mxu0 0.0
  %285 = vmatprep.subr.mxu0 0.0
  %286 = vmatpush1.msra.mxu0 0.0
  %287 = vmatprep.subr.mxu0 0.0
  %288 = vmatpush1.msra.mxu0 0.0
  %289 = vmatprep.subr.mxu0 0.0
  %290 = vmatpush1.msra.mxu0 0.0
  %291 = vmatprep.subr.mxu0 0.0
  %292 = vmatpush1.msra.mxu0 0.0
  %293 = vmatprep.subr.mxu0 0.0
  %294 = vmatpush1.msra.mxu0 0.0
  %295 = vmatprep.subr.mxu0 0.0
  %296 = vmatpush1.msra.mxu0 0.0
  %297 = vmatprep.subr.mxu0 0.0
  %298 = vmatpush1.msra.mxu0 0.0
  %299 = vmatprep.subr.mxu0 0.0
  %300 = vmatpush1.msra.mxu0 0.0
  %301 = vmatprep.subr.mxu0 0.0
  %302 = vmatpush1.msra.mxu0 0.0
  %303 = vmatprep.subr.mxu0 0.0
  %304 = vmatpush1.msra.mxu0 0.0
  %305 = vmatprep.subr.mxu0 0.0
  %306 = vmatpush1.msra.mxu0 0.0
  %307 = vmatprep.subr.mxu0 0.0
  %308 = vmatpush1.msra.mxu0 0.0
  %309 = vmatprep.subr.mxu0 0.0
  %310 = vmatpush1.msra.mxu0 0.0
  %311 = vmatprep.subr.mxu0 0.0
  %312 = vmatpush1.msra.mxu0 0.0
  %313 = vmatprep.subr.mxu0 0.0
  %314 = vmatpush1.msra.mxu0 0.0
  %315 = vmatprep.subr.mxu0 0.0
  %316 = vmatpush1.msra.mxu0 0.0
  %317 = vmatprep.subr.mxu0 0.0
  %318 = vmatpush1.msra.mxu0 0.0
  %319 = vmatprep.subr.mxu0 0.0
  %320 = vmatpush1.msra.mxu0 0.0
  %321 = vmatprep.subr.mxu0 0.0
  %322 = vmatpush1.msra.mxu0 0.0
  %323 = vmatprep.subr.mxu0 0.0
  %324 = vmatpush1.msra.mxu0 0.0
  %325 = vmatprep.mubr.f32.mxu0 0.0
  %326 = vmatmul.mubr.f32.gmra.mrb[0].mxu0 %v256
  %v327 = vpop.f32.mrb[0].mxu0
  %v328 = vadd.f32 0.0, %v327
  %v329 = vpop.f32.mrb[0].mxu0
  %330 = vdwg.mxu0
  %vm331 = vcmp.gt.f32.partialorder %v328, 0.0
  %v332 = vmul.f32 %v328, 0.22916667
  %v333 = vsel %vm331, %v328, %v332
  %v335 = vsel %vm174, %v333, 0
  %v338 = vsel %vm178, %v92, 0
  %340 = vmatprep.subr.mxu0 0.0
  %341 = vmatpush1.msra.mxu0 %v88
  %342 = vmatprep.subr.mxu0 0.0
  %343 = vmatpush1.msra.mxu0 %v89
  %344 = vmatprep.subr.mxu0 0.0
  %345 = vmatpush1.msra.mxu0 %v90
  %346 = vmatprep.subr.mxu0 0.0
  %347 = vmatpush1.msra.mxu0 %v91
  %348 = vmatprep.subr.mxu0 0.0
  %349 = vmatpush1.msra.mxu0 %v338
  %350 = vmatprep.subr.mxu0 0.0
  %351 = vmatpush1.msra.mxu0 0.0
  %352 = vmatprep.subr.mxu0 0.0
  %353 = vmatpush1.msra.mxu0 0.0
  %354 = vmatprep.subr.mxu0 0.0
  %355 = vmatpush1.msra.mxu0 0.0
  %356 = vmatprep.subr.mxu0 0.0
  %357 = vmatpush1.msra.mxu0 0.0
  %358 = vmatprep.subr.mxu0 0.0
  %359 = vmatpush1.msra.mxu0 0.0
  %360 = vmatprep.subr.mxu0 0.0
  %361 = vmatpush1.msra.mxu0 0.0
  %362 = vmatprep.subr.mxu0 0.0
  %363 = vmatpush1.msra.mxu0 0.0
  %364 = vmatprep.subr.mxu0 0.0
  %365 = vmatpush1.msra.mxu0 0.0
  %366 = vmatprep.subr.mxu0 0.0
  %367 = vmatpush1.msra.mxu0 0.0
  %368 = vmatprep.subr.mxu0 0.0
  %369 = vmatpush1.msra.mxu0 0.0
  %370 = vmatprep.subr.mxu0 0.0
  %371 = vmatpush1.msra.mxu0 0.0
  %372 = vmatprep.subr.mxu0 0.0
  %373 = vmatpush1.msra.mxu0 0.0
  %374 = vmatprep.subr.mxu0 0.0
  %375 = vmatpush1.msra.mxu0 0.0
  %376 = vmatprep.subr.mxu0 0.0
  %377 = vmatpush1.msra.mxu0 0.0
  %378 = vmatprep.subr.mxu0 0.0
  %379 = vmatpush1.msra.mxu0 0.0
  %380 = vmatprep.subr.mxu0 0.0
  %381 = vmatpush1.msra.mxu0 0.0
  %382 = vmatprep.subr.mxu0 0.0
  %383 = vmatpush1.msra.mxu0 0.0
  %384 = vmatprep.subr.mxu0 0.0
  %385 = vmatpush1.msra.mxu0 0.0
  %386 = vmatprep.subr.mxu0 0.0
  %387 = vmatpush1.msra.mxu0 0.0
  %388 = vmatprep.subr.mxu0 0.0
  %389 = vmatpush1.msra.mxu0 0.0
  %390 = vmatprep.subr.mxu0 0.0
  %391 = vmatpush1.msra.mxu0 0.0
  %392 = vmatprep.subr.mxu0 0.0
  %393 = vmatpush1.msra.mxu0 0.0
  %394 = vmatprep.subr.mxu0 0.0
  %395 = vmatpush1.msra.mxu0 0.0
  %396 = vmatprep.subr.mxu0 0.0
  %397 = vmatpush1.msra.mxu0 0.0
  %398 = vmatprep.subr.mxu0 0.0
  %399 = vmatpush1.msra.mxu0 0.0
  %400 = vmatprep.subr.mxu0 0.0
  %401 = vmatpush1.msra.mxu0 0.0
  %402 = vmatprep.subr.mxu0 0.0
  %403 = vmatpush1.msra.mxu0 0.0
  %404 = vmatprep.mubr.f32.mxu0 0.0
  %405 = vmatmul.mubr.f32.gmra.mrb[0].mxu0 %v335
  %v406 = vpop.f32.mrb[0].mxu0
  %v407 = vadd.f32 0.0, %v406
  %v408 = vpop.f32.mrb[0].mxu0
  %409 = vdwg.mxu0
  %vm410 = vcmp.gt.f32.partialorder %v407, 0.0
  %v411 = vmul.f32 %v407, 0.22916667
  %v412 = vsel %vm410, %v407, %v411
  %v413 = vsel %vm27, %v412, -inf
  %414 = vmax.xlane.f32.xlu0 %v413
  %v415 = vpop.xlane.xlu0 %414
  %v416 = vsub.f32 %v412, %v415
  %v417 = vmul.f32 %v416, 1.442695
  %v418 = vpow.pop %v417
  %v419 = vsel %vm27, %v418, 0.0
  %420 = vadd.xlane.f32.xlu0 %v419
  %v421 = vpop.xlane.xlu0 %420
  %v422 = vrcp.pop %v421
  %v423 = vmul.f32 %v418, %v422
  %424 = vst.msk [vmem:[%s5] sm:$0xff] %vm27, %v423
  %426 = vrot.lane.b32.xlu0 %v423, 9
  %v427 = vpop.permute.xlu0 %426
  %vm429 = vcmask 138312
  %430 = vst.msk [vmem:[#allocation2] sm:$0xff] %vm429, %v427
  %v431 = vsel %vm27, %v423, -inf
  %432 = vmax.xlane.f32.xlu0 %v431
  %v433 = vpop.xlane.xlu0 %432
  %vm434 = vcmp.eq.f32.partialorder %v423, %v433
  %v435 = vsel %vm434, %v22, 8
  %v436 = vsel %vm27, %v435, 2147483647
  %v437 = vand.u32 %v436, 65535
  %v438 = vshra.s32 %v436, 16
  %v439 = vcvt.s32.f32 %v437
  %v440 = vcvt.s32.f32 %v438
  %441 = vmin.xlane.f32.xlu0 %v440
  %v442 = vpop.xlane.xlu0 %441
  %vm443 = vcmp.eq.f32.partialorder %v440, %v442
  %v444 = vsel %vm443, %v439, inf
  %445 = vmin.xlane.f32.xlu0 %v444
  %v446 = vpop.xlane.xlu0 %445
  %v447 = vcvt.f32.s32 %v446
  %v448 = vcvt.f32.s32 %v442
  %v449 = vshll.u32 %v448, 16
  %v450 = vadd.s32 %v449, %v447
  %vm451 = vcmp.eq.s32.totalorder %v22, %v450
  %v452 = vsel %vm451, %v51, 0.0
  %v453 = vsel %vm27, %v452, 0.0
  %454 = vadd.xlane.f32.xlu0 %v453
  %v455 = vpop.xlane.xlu0 %454
  %vm456 = vcmask 277768
  %457 = vst.msk [vmem:[%s5] sm:$0xff] %vm456, %v455
  %v458 = vcvt.s32.f32 %v450
  %vm459 = vcmask 318768
  %460 = vst.msk [vmem:[%s5] sm:$0xff] %vm459, %v458
  %s461 = scalar_lea.vmem %s1, 128
  %v462 = vld [vmem:[%s461] sm:$0xff]
  %v463 = vld [vmem:[%s461 + $0x8] sm:$0xff]
  %v464 = vld [vmem:[%s461 + $0x10] sm:$0xff]
  %v465 = vld [vmem:[%s461 + $0x18] sm:$0xff]
  %v466 = vld [vmem:[%s461 + $0x20] sm:$0xff]
  %v467 = vld [vmem:[%s461 + $0x28] sm:$0xff]
  %v468 = vld [vmem:[%s461 + $0x30] sm:$0xff]
  %v469 = vld [vmem:[%s461 + $0x38] sm:$0xff]
  %v470 = vld [vmem:[%s461 + $0x40] sm:$0xff]
  %v471 = vld [vmem:[%s461 + $0x48] sm:$0xff]
  %v472 = vld [vmem:[%s461 + $0x50] sm:$0xff]
  %v473 = vld [vmem:[%s461 + $0x58] sm:$0xff]
  %v474 = vld [vmem:[%s461 + $0x60] sm:$0xff]
  %v475 = vld [vmem:[%s461 + $0x68] sm:$0xff]
  %v476 = vld [vmem:[%s461 + $0x70] sm:$0xff]
  %v477 = vld [vmem:[%s461 + $0x78] sm:$0xff]
  %s478 = scalar_lea.vmem %s2, 40
  %v479 = vld [vmem:[%s478] sm:$0xff]
  %v480 = vld [vmem:[%s478 + $0x8] sm:$0xff]
  %v481 = vld [vmem:[%s478 + $0x10] sm:$0xff]
  %v482 = vld [vmem:[%s478 + $0x18] sm:$0xff]
  %v483 = vld [vmem:[%s478 + $0x20] sm:$0x1]
  %s484 = scalar_lea.vmem %s3, 40
  %v485 = vld [vmem:[%s484] sm:$0xff]
  %v486 = vld [vmem:[%s484 + $0x8] sm:$0xff]
  %v487 = vld [vmem:[%s484 + $0x10] sm:$0xff]
  %v488 = vld [vmem:[%s484 + $0x18] sm:$0xff]
  %v489 = vld [vmem:[%s484 + $0x20] sm:$0x1]
  %s490 = scalar_lea.vmem %s4, 40
  %v491 = vld [vmem:[%s490] sm:$0xff]
  %v492 = vld [vmem:[%s490 + $0x8] sm:$0xff]
  %v493 = vld [vmem:[%s490 + $0x10] sm:$0xff]
  %v494 = vld [vmem:[%s490 + $0x18] sm:$0xff]
  %v495 = vld [vmem:[%s490 + $0x20] sm:$0x1]
  %v496 = vld [vmem:[#allocation2] sm:$0xff]
  %v497 = vlaneseq
  %v498 = vshrl.u32 %v497, 7
  %v499 = vsub.s32 1, %v498
  %v500 = vrot.slane %v464, %v499
  %v501 = vmul.f32 %v455, %v500
  %502 = vmatprep.subr.mxu0 0.0
  %503 = vmatpush1.msra.mxu0 %v462
  %504 = vmatprep.subr.mxu0 0.0
  %505 = vmatpush1.msra.mxu0 %v463
  %506 = vmatprep.subr.mxu0 0.0
  %507 = vmatpush1.msra.mxu0 %v464
  %508 = vmatprep.subr.mxu0 0.0
  %509 = vmatpush1.msra.mxu0 %v465
  %510 = vmatprep.subr.mxu0 0.0
  %511 = vmatpush1.msra.mxu0 %v466
  %512 = vmatprep.subr.mxu0 0.0
  %513 = vmatpush1.msra.mxu0 %v467
  %514 = vmatprep.subr.mxu0 0.0
  %515 = vmatpush1.msra.mxu0 %v468
  %516 = vmatprep.subr.mxu0 0.0
  %517 = vmatpush1.msra.mxu0 %v469
  %518 = vmatprep.subr.mxu0 0.0
  %519 = vmatpush1.msra.mxu0 %v470
  %520 = vmatprep.subr.mxu0 0.0
  %521 = vmatpush1.msra.mxu0 %v471
  %522 = vmatprep.subr.mxu0 0.0
  %523 = vmatpush1.msra.mxu0 %v472
  %524 = vmatprep.subr.mxu0 0.0
  %525 = vmatpush1.msra.mxu0 %v473
  %526 = vmatprep.subr.mxu0 0.0
  %527 = vmatpush1.msra.mxu0 %v474
  %528 = vmatprep.subr.mxu0 0.0
  %529 = vmatpush1.msra.mxu0 %v475
  %530 = vmatprep.subr.mxu0 0.0
  %531 = vmatpush1.msra.mxu0 %v476
  %532 = vmatprep.subr.mxu0 0.0
  %533 = vmatpush1.msra.mxu0 %v477
  %534 = vmatprep.subr.mxu0 0.0
  %535 = vmatpush1.msra.mxu0 0.0
  %536 = vmatprep.subr.mxu0 0.0
  %537 = vmatpush1.msra.mxu0 0.0
  %538 = vmatprep.subr.mxu0 0.0
  %539 = vmatpush1.msra.mxu0 0.0
  %540 = vmatprep.subr.mxu0 0.0
  %541 = vmatpush1.msra.mxu0 0.0
  %542 = vmatprep.subr.mxu0 0.0
  %543 = vmatpush1.msra.mxu0 0.0
  %544 = vmatprep.subr.mxu0 0.0
  %545 = vmatpush1.msra.mxu0 0.0
  %546 = vmatprep.subr.mxu0 0.0
  %547 = vmatpush1.msra.mxu0 0.0
  %548 = vmatprep.subr.mxu0 0.0
  %549 = vmatpush1.msra.mxu0 0.0
  %550 = vmatprep.subr.mxu0 0.0
  %551 = vmatpush1.msra.mxu0 0.0
  %552 = vmatprep.subr.mxu0 0.0
  %553 = vmatpush1.msra.mxu0 0.0
  %554 = vmatprep.subr.mxu0 0.0
  %555 = vmatpush1.msra.mxu0 0.0
  %556 = vmatprep.subr.mxu0 0.0
  %557 = vmatpush1.msra.mxu0 0.0
  %558 = vmatprep.subr.mxu0 0.0
  %559 = vmatpush1.msra.mxu0 0.0
  %560 = vmatprep.subr.mxu0 0.0
  %561 = vmatpush1.msra.mxu0 0.0
  %562 = vmatprep.subr.mxu0 0.0
  %563 = vmatpush1.msra.mxu0 0.0
  %564 = vmatprep.subr.mxu0 0.0
  %565 = vmatpush1.msra.mxu0 0.0
  %566 = vmatprep.mubr.f32.mxu0 0.0
  %567 = vmatmul.mubr.f32.gmra.mrb[0].mxu0 %v496
  %v568 = vpop.f32.mrb[0].mxu0
  %v569 = vadd.f32 %v501, %v568
  %v570 = vpop.f32.mrb[0].mxu0
  %571 = vdwg.mxu0
  %vm572 = vcmp.gt.f32.partialorder %v569, 0.0
  %v573 = vmul.f32 %v569, 0.22916667
  %v574 = vsel %vm572, %v569, %v573
  %vm575 = vcmask 146568
  %576 = vst.msk [vmem:[#allocation2] sm:$0xff] %vm575, %v455
  %v578 = vsel %vm174, %v574, 0
  %v581 = vsel %vm178, %v483, 0
  %583 = vmatprep.subr.mxu0 0.0
  %584 = vmatpush1.msra.mxu0 %v479
  %585 = vmatprep.subr.mxu0 0.0
  %586 = vmatpush1.msra.mxu0 %v480
  %587 = vmatprep.subr.mxu0 0.0
  %588 = vmatpush1.msra.mxu0 %v481
  %589 = vmatprep.subr.mxu0 0.0
  %590 = vmatpush1.msra.mxu0 %v482
  %591 = vmatprep.subr.mxu0 0.0
  %592 = vmatpush1.msra.mxu0 %v581
  %593 = vmatprep.subr.mxu0 0.0
  %594 = vmatpush1.msra.mxu0 0.0
  %595 = vmatprep.subr.mxu0 0.0
  %596 = vmatpush1.msra.mxu0 0.0
  %597 = vmatprep.subr.mxu0 0.0
  %598 = vmatpush1.msra.mxu0 0.0
  %599 = vmatprep.subr.mxu0 0.0
  %600 = vmatpush1.msra.mxu0 0.0
  %601 = vmatprep.subr.mxu0 0.0
  %602 = vmatpush1.msra.mxu0 0.0
  %603 = vmatprep.subr.mxu0 0.0
  %604 = vmatpush1.msra.mxu0 0.0
  %605 = vmatprep.subr.mxu0 0.0
  %606 = vmatpush1.msra.mxu0 0.0
  %607 = vmatprep.subr.mxu0 0.0
  %608 = vmatpush1.msra.mxu0 0.0
  %609 = vmatprep.subr.mxu0 0.0
  %610 = vmatpush1.msra.mxu0 0.0
  %611 = vmatprep.subr.mxu0 0.0
  %612 = vmatpush1.msra.mxu0 0.0
  %613 = vmatprep.subr.mxu0 0.0
  %614 = vmatpush1.msra.mxu0 0.0
  %615 = vmatprep.subr.mxu0 0.0
  %616 = vmatpush1.msra.mxu0 0.0
  %617 = vmatprep.subr.mxu0 0.0
  %618 = vmatpush1.msra.mxu0 0.0
  %619 = vmatprep.subr.mxu0 0.0
  %620 = vmatpush1.msra.mxu0 0.0
  %621 = vmatprep.subr.mxu0 0.0
  %622 = vmatpush1.msra.mxu0 0.0
  %623 = vmatprep.subr.mxu0 0.0
  %624 = vmatpush1.msra.mxu0 0.0
  %625 = vmatprep.subr.mxu0 0.0
  %626 = vmatpush1.msra.mxu0 0.0
  %627 = vmatprep.subr.mxu0 0.0
  %628 = vmatpush1.msra.mxu0 0.0
  %629 = vmatprep.subr.mxu0 0.0
  %630 = vmatpush1.msra.mxu0 0.0
  %631 = vmatprep.subr.mxu0 0.0
  %632 = vmatpush1.msra.mxu0 0.0
  %633 = vmatprep.subr.mxu0 0.0
  %634 = vmatpush1.msra.mxu0 0.0
  %635 = vmatprep.subr.mxu0 0.0
  %636 = vmatpush1.msra.mxu0 0.0
  %637 = vmatprep.subr.mxu0 0.0
  %638 = vmatpush1.msra.mxu0 0.0
  %639 = vmatprep.subr.mxu0 0.0
  %640 = vmatpush1.msra.mxu0 0.0
  %641 = vmatprep.subr.mxu0 0.0
  %642 = vmatpush1.msra.mxu0 0.0
  %643 = vmatprep.subr.mxu0 0.0
  %644 = vmatpush1.msra.mxu0 0.0
  %645 = vmatprep.subr.mxu0 0.0
  %646 = vmatpush1.msra.mxu0 0.0
  %647 = vmatprep.mubr.f32.mxu0 0.0
  %648 = vmatmul.mubr.f32.gmra.mrb[0].mxu0 %v578
  %v649 = vpop.f32.mrb[0].mxu0
  %v650 = vadd.f32 0.0, %v649
  %v651 = vpop.f32.mrb[0].mxu0
  %652 = vdwg.mxu0
  %vm653 = vcmp.gt.f32.partialorder %v650, 0.0
  %v654 = vmul.f32 %v650, 0.22916667
  %v655 = vsel %vm653, %v650, %v654
  %v657 = vsel %vm174, %v655, 0
  %v660 = vsel %vm178, %v489, 0
  %662 = vmatprep.subr.mxu0 0.0
  %663 = vmatpush1.msra.mxu0 %v485
  %664 = vmatprep.subr.mxu0 0.0
  %665 = vmatpush1.msra.mxu0 %v486
  %666 = vmatprep.subr.mxu0 0.0
  %667 = vmatpush1.msra.mxu0 %v487
  %668 = vmatprep.subr.mxu0 0.0
  %669 = vmatpush1.msra.mxu0 %v488
  %670 = vmatprep.subr.mxu0 0.0
  %671 = vmatpush1.msra.mxu0 %v660
  %672 = vmatprep.subr.mxu0 0.0
  %673 = vmatpush1.msra.mxu0 0.0
  %674 = vmatprep.subr.mxu0 0.0
  %675 = vmatpush1.msra.mxu0 0.0
  %676 = vmatprep.subr.mxu0 0.0
  %677 = vmatpush1.msra.mxu0 0.0
  %678 = vmatprep.subr.mxu0 0.0
  %679 = vmatpush1.msra.mxu0 0.0
  %680 = vmatprep.subr.mxu0 0.0
  %681 = vmatpush1.msra.mxu0 0.0
  %682 = vmatprep.subr.mxu0 0.0
  %683 = vmatpush1.msra.mxu0 0.0
  %684 = vmatprep.subr.mxu0 0.0
  %685 = vmatpush1.msra.mxu0 0.0
  %686 = vmatprep.subr.mxu0 0.0
  %687 = vmatpush1.msra.mxu0 0.0
  %688 = vmatprep.subr.mxu0 0.0
  %689 = vmatpush1.msra.mxu0 0.0
  %690 = vmatprep.subr.mxu0 0.0
  %691 = vmatpush1.msra.mxu0 0.0
  %692 = vmatprep.subr.mxu0 0.0
  %693 = vmatpush1.msra.mxu0 0.0
  %694 = vmatprep.subr.mxu0 0.0
  %695 = vmatpush1.msra.mxu0 0.0
  %696 = vmatprep.subr.mxu0 0.0
  %697 = vmatpush1.msra.mxu0 0.0
  %698 = vmatprep.subr.mxu0 0.0
  %699 = vmatpush1.msra.mxu0 0.0
  %700 = vmatprep.subr.mxu0 0.0
  %701 = vmatpush1.msra.mxu0 0.0
  %702 = vmatprep.subr.mxu0 0.0
  %703 = vmatpush1.msra.mxu0 0.0
  %704 = vmatprep.subr.mxu0 0.0
  %705 = vmatpush1.msra.mxu0 0.0
  %706 = vmatprep.subr.mxu0 0.0
  %707 = vmatpush1.msra.mxu0 0.0
  %708 = vmatprep.subr.mxu0 0.0
  %709 = vmatpush1.msra.mxu0 0.0
  %710 = vmatprep.subr.mxu0 0.0
  %711 = vmatpush1.msra.mxu0 0.0
  %712 = vmatprep.subr.mxu0 0.0
  %713 = vmatpush1.msra.mxu0 0.0
  %714 = vmatprep.subr.mxu0 0.0
  %715 = vmatpush1.msra.mxu0 0.0
  %716 = vmatprep.subr.mxu0 0.0
  %717 = vmatpush1.msra.mxu0 0.0
  %718 = vmatprep.subr.mxu0 0.0
  %719 = vmatpush1.msra.mxu0 0.0
  %720 = vmatprep.subr.mxu0 0.0
  %721 = vmatpush1.msra.mxu0 0.0
  %722 = vmatprep.subr.mxu0 0.0
  %723 = vmatpush1.msra.mxu0 0.0
  %724 = vmatprep.subr.mxu0 0.0
  %725 = vmatpush1.msra.mxu0 0.0
  %726 = vmatprep.mubr.f32.mxu0 0.0
  %727 = vmatmul.mubr.f32.gmra.mrb[0].mxu0 %v657
  %v728 = vpop.f32.mrb[0].mxu0
  %v729 = vadd.f32 0.0, %v728
  %v730 = vpop.f32.mrb[0].mxu0
  %731 = vdwg.mxu0
  %vm732 = vcmp.gt.f32.partialorder %v729, 0.0
  %v733 = vmul.f32 %v729, 0.22916667
  %v734 = vsel %vm732, %v729, %v733
  %v736 = vsel %vm174, %v734, 0
  %v739 = vsel %vm178, %v495, 0
  %741 = vmatprep.subr.mxu0 0.0
  %742 = vmatpush1.msra.mxu0 %v491
  %743 = vmatprep.subr.mxu0 0.0
  %744 = vmatpush1.msra.mxu0 %v492
  %745 = vmatprep.subr.mxu0 0.0
  %746 = vmatpush1.msra.mxu0 %v493
  %747 = vmatprep.subr.mxu0 0.0
  %748 = vmatpush1.msra.mxu0 %v494
  %749 = vmatprep.subr.mxu0 0.0
  %750 = vmatpush1.msra.mxu0 %v739
  %751 = vmatprep.subr.mxu0 0.0
  %752 = vmatpush1.msra.mxu0 0.0
  %753 = vmatprep.subr.mxu0 0.0
  %754 = vmatpush1.msra.mxu0 0.0
  %755 = vmatprep.subr.mxu0 0.0
  %756 = vmatpush1.msra.mxu0 0.0
  %757 = vmatprep.subr.mxu0 0.0
  %758 = vmatpush1.msra.mxu0 0.0
  %759 = vmatprep.subr.mxu0 0.0
  %760 = vmatpush1.msra.mxu0 0.0
  %761 = vmatprep.subr.mxu0 0.0
  %762 = vmatpush1.msra.mxu0 0.0
  %763 = vmatprep.subr.mxu0 0.0
  %764 = vmatpush1.msra.mxu0 0.0
  %765 = vmatprep.subr.mxu0 0.0
  %766 = vmatpush1.msra.mxu0 0.0
  %767 = vmatprep.subr.mxu0 0.0
  %768 = vmatpush1.msra.mxu0 0.0
  %769 = vmatprep.subr.mxu0 0.0
  %770 = vmatpush1.msra.mxu0 0.0
  %771 = vmatprep.subr.mxu0 0.0
  %772 = vmatpush1.msra.mxu0 0.0
  %773 = vmatprep.subr.mxu0 0.0
  %774 = vmatpush1.msra.mxu0 0.0
  %775 = vmatprep.subr.mxu0 0.0
  %776 = vmatpush1.msra.mxu0 0.0
  %777 = vmatprep.subr.mxu0 0.0
  %778 = vmatpush1.msra.mxu0 0.0
  %779 = vmatprep.subr.mxu0 0.0
  %780 = vmatpush1.msra.mxu0 0.0
  %781 = vmatprep.subr.mxu0 0.0
  %782 = vmatpush1.msra.mxu0 0.0
  %783 = vmatprep.subr.mxu0 0.0
  %784 = vmatpush1.msra.mxu0 0.0
  %785 = vmatprep.subr.mxu0 0.0
  %786 = vmatpush1.msra.mxu0 0.0
  %787 = vmatprep.subr.mxu0 0.0
  %788 = vmatpush1.msra.mxu0 0.0
  %789 = vmatprep.subr.mxu0 0.0
  %790 = vmatpush1.msra.mxu0 0.0
  %791 = vmatprep.subr.mxu0 0.0
  %792 = vmatpush1.msra.mxu0 0.0
  %793 = vmatprep.subr.mxu0 0.0
  %794 = vmatpush1.msra.mxu0 0.0
  %795 = vmatprep.subr.mxu0 0.0
  %796 = vmatpush1.msra.mxu0 0.0
  %797 = vmatprep.subr.mxu0 0.0
  %798 = vmatpush1.msra.mxu0 0.0
  %799 = vmatprep.subr.mxu0 0.0
  %800 = vmatpush1.msra.mxu0 0.0
  %801 = vmatprep.subr.mxu0 0.0
  %802 = vmatpush1.msra.mxu0 0.0
  %803 = vmatprep.subr.mxu0 0.0
  %804 = vmatpush1.msra.mxu0 0.0
  %805 = vmatprep.mubr.f32.mxu0 0.0
  %806 = vmatmul.mubr.f32.gmra.mrb[0].mxu0 %v736
  %v807 = vpop.f32.mrb[0].mxu0
  %v808 = vadd.f32 0.0, %v807
  %v809 = vpop.f32.mrb[0].mxu0
  %810 = vdwg.mxu0
  %vm811 = vcmp.gt.f32.partialorder %v808, 0.0
  %v812 = vmul.f32 %v808, 0.22916667
  %v813 = vsel %vm811, %v808, %v812
  %v814 = vsel %vm27, %v813, -inf
  %815 = vmax.xlane.f32.xlu0 %v814
  %v816 = vpop.xlane.xlu0 %815
  %v817 = vsub.f32 %v813, %v816
  %v818 = vmul.f32 %v817, 1.442695
  %v819 = vpow.pop %v818
  %v820 = vsel %vm27, %v819, 0.0
  %821 = vadd.xlane.f32.xlu0 %v820
  %v822 = vpop.xlane.xlu0 %821
  %v823 = vrcp.pop %v822
  %v824 = vmul.f32 %v819, %v823
  %826 = vrot.lane.b32.xlu0 %v824, 8
  %v827 = vpop.permute.xlu0 %826
  %vm829 = vcmask 130112
  %830 = vst.msk [vmem:[%s5] sm:$0xff] %vm829, %v827
  %831 = vrot.lane.b32.xlu0 %v824, 18
  %v832 = vpop.permute.xlu0 %831
  %vm834 = vcmask 212112
  %835 = vst.msk [vmem:[#allocation2] sm:$0xff] %vm834, %v832
  %v836 = vsel %vm27, %v824, -inf
  %837 = vmax.xlane.f32.xlu0 %v836
  %v838 = vpop.xlane.xlu0 %837
  %vm839 = vcmp.eq.f32.partialorder %v824, %v838
  %v840 = vsel %vm839, %v22, 8
  %v841 = vsel %vm27, %v840, 2147483647
  %v842 = vand.u32 %v841, 65535
  %v843 = vshra.s32 %v841, 16
  %v844 = vcvt.s32.f32 %v842
  %v845 = vcvt.s32.f32 %v843
  %846 = vmin.xlane.f32.xlu0 %v845
  %v847 = vpop.xlane.xlu0 %846
  %vm848 = vcmp.eq.f32.partialorder %v845, %v847
  %v849 = vsel %vm848, %v844, inf
  %850 = vmin.xlane.f32.xlu0 %v849
  %v851 = vpop.xlane.xlu0 %850
  %v852 = vcvt.f32.s32 %v851
  %v853 = vcvt.f32.s32 %v847
  %v854 = vshll.u32 %v853, 16
  %v855 = vadd.s32 %v854, %v852
  %vm856 = vcmp.eq.s32.totalorder %v22, %v855
  %v857 = vsel %vm856, %v51, 0.0
  %v858 = vsel %vm27, %v857, 0.0
  %859 = vadd.xlane.f32.xlu0 %v858
  %v860 = vpop.xlane.xlu0 %859
  %vm861 = vcmask 285968
  %862 = vst.msk [vmem:[%s5] sm:$0xff] %vm861, %v860
  %v863 = vcvt.s32.f32 %v855
  %vm864 = vcmask 326968
  %865 = vst.msk [vmem:[%s5] sm:$0xff] %vm864, %v863
  %s866 = scalar_lea.vmem %s1, 256
  %v867 = vld [vmem:[%s866] sm:$0xff]
  %v868 = vld [vmem:[%s866 + $0x8] sm:$0xff]
  %v869 = vld [vmem:[%s866 + $0x10] sm:$0xff]
  %v870 = vld [vmem:[%s866 + $0x18] sm:$0xff]
  %v871 = vld [vmem:[%s866 + $0x20] sm:$0xff]
  %v872 = vld [vmem:[%s866 + $0x28] sm:$0xff]
  %v873 = vld [vmem:[%s866 + $0x30] sm:$0xff]
  %v874 = vld [vmem:[%s866 + $0x38] sm:$0xff]
  %v875 = vld [vmem:[%s866 + $0x40] sm:$0xff]
  %v876 = vld [vmem:[%s866 + $0x48] sm:$0xff]
  %v877 = vld [vmem:[%s866 + $0x50] sm:$0xff]
  %v878 = vld [vmem:[%s866 + $0x58] sm:$0xff]
  %v879 = vld [vmem:[%s866 + $0x60] sm:$0xff]
  %v880 = vld [vmem:[%s866 + $0x68] sm:$0xff]
  %v881 = vld [vmem:[%s866 + $0x70] sm:$0xff]
  %v882 = vld [vmem:[%s866 + $0x78] sm:$0xff]
  %s883 = scalar_lea.vmem %s2, 80
  %v884 = vld [vmem:[%s883] sm:$0xff]
  %v885 = vld [vmem:[%s883 + $0x8] sm:$0xff]
  %v886 = vld [vmem:[%s883 + $0x10] sm:$0xff]
  %v887 = vld [vmem:[%s883 + $0x18] sm:$0xff]
  %v888 = vld [vmem:[%s883 + $0x20] sm:$0x1]
  %s889 = scalar_lea.vmem %s3, 80
  %v890 = vld [vmem:[%s889] sm:$0xff]
  %v891 = vld [vmem:[%s889 + $0x8] sm:$0xff]
  %v892 = vld [vmem:[%s889 + $0x10] sm:$0xff]
  %v893 = vld [vmem:[%s889 + $0x18] sm:$0xff]
  %v894 = vld [vmem:[%s889 + $0x20] sm:$0x1]
  %s895 = scalar_lea.vmem %s4, 80
  %v896 = vld [vmem:[%s895] sm:$0xff]
  %v897 = vld [vmem:[%s895 + $0x8] sm:$0xff]
  %v898 = vld [vmem:[%s895 + $0x10] sm:$0xff]
  %v899 = vld [vmem:[%s895 + $0x18] sm:$0xff]
  %v900 = vld [vmem:[%s895 + $0x20] sm:$0x1]
  %v901 = vld [vmem:[#allocation2] sm:$0xff]
  %v902 = vlaneseq
  %v903 = vshrl.u32 %v902, 7
  %v904 = vsub.s32 2, %v903
  %v905 = vrot.slane %v870, %v904
  %v906 = vmul.f32 %v860, %v905
  %907 = vmatprep.subr.mxu0 0.0
  %908 = vmatpush1.msra.mxu0 %v867
  %909 = vmatprep.subr.mxu0 0.0
  %910 = vmatpush1.msra.mxu0 %v868
  %911 = vmatprep.subr.mxu0 0.0
  %912 = vmatpush1.msra.mxu0 %v869
  %913 = vmatprep.subr.mxu0 0.0
  %914 = vmatpush1.msra.mxu0 %v870
  %915 = vmatprep.subr.mxu0 0.0
  %916 = vmatpush1.msra.mxu0 %v871
  %917 = vmatprep.subr.mxu0 0.0
  %918 = vmatpush1.msra.mxu0 %v872
  %919 = vmatprep.subr.mxu0 0.0
  %920 = vmatpush1.msra.mxu0 %v873
  %921 = vmatprep.subr.mxu0 0.0
  %922 = vmatpush1.msra.mxu0 %v874
  %923 = vmatprep.subr.mxu0 0.0
  %924 = vmatpush1.msra.mxu0 %v875
  %925 = vmatprep.subr.mxu0 0.0
  %926 = vmatpush1.msra.mxu0 %v876
  %927 = vmatprep.subr.mxu0 0.0
  %928 = vmatpush1.msra.mxu0 %v877
  %929 = vmatprep.subr.mxu0 0.0
  %930 = vmatpush1.msra.mxu0 %v878
  %931 = vmatprep.subr.mxu0 0.0
  %932 = vmatpush1.msra.mxu0 %v879
  %933 = vmatprep.subr.mxu0 0.0
  %934 = vmatpush1.msra.mxu0 %v880
  %935 = vmatprep.subr.mxu0 0.0
  %936 = vmatpush1.msra.mxu0 %v881
  %937 = vmatprep.subr.mxu0 0.0
  %938 = vmatpush1.msra.mxu0 %v882
  %939 = vmatprep.subr.mxu0 0.0
  %940 = vmatpush1.msra.mxu0 0.0
  %941 = vmatprep.subr.mxu0 0.0
  %942 = vmatpush1.msra.mxu0 0.0
  %943 = vmatprep.subr.mxu0 0.0
  %944 = vmatpush1.msra.mxu0 0.0
  %945 = vmatprep.subr.mxu0 0.0
  %946 = vmatpush1.msra.mxu0 0.0
  %947 = vmatprep.subr.mxu0 0.0
  %948 = vmatpush1.msra.mxu0 0.0
  %949 = vmatprep.subr.mxu0 0.0
  %950 = vmatpush1.msra.mxu0 0.0
  %951 = vmatprep.subr.mxu0 0.0
  %952 = vmatpush1.msra.mxu0 0.0
  %953 = vmatprep.subr.mxu0 0.0
  %954 = vmatpush1.msra.mxu0 0.0
  %955 = vmatprep.subr.mxu0 0.0
  %956 = vmatpush1.msra.mxu0 0.0
  %957 = vmatprep.subr.mxu0 0.0
  %958 = vmatpush1.msra.mxu0 0.0
  %959 = vmatprep.subr.mxu0 0.0
  %960 = vmatpush1.msra.mxu0 0.0
  %961 = vmatprep.subr.mxu0 0.0
  %962 = vmatpush1.msra.mxu0 0.0
  %963 = vmatprep.subr.mxu0 0.0
  %964 = vmatpush1.msra.mxu0 0.0
  %965 = vmatprep.subr.mxu0 0.0
  %966 = vmatpush1.msra.mxu0 0.0
  %967 = vmatprep.subr.mxu0 0.0
  %968 = vmatpush1.msra.mxu0 0.0
  %969 = vmatprep.subr.mxu0 0.0
  %970 = vmatpush1.msra.mxu0 0.0
  %971 = vmatprep.mubr.f32.mxu0 0.0
  %972 = vmatmul.mubr.f32.gmra.mrb[0].mxu0 %v901
  %v973 = vpop.f32.mrb[0].mxu0
  %v974 = vadd.f32 %v906, %v973
  %v975 = vpop.f32.mrb[0].mxu0
  %976 = vdwg.mxu0
  %vm977 = vcmp.gt.f32.partialorder %v974, 0.0
  %v978 = vmul.f32 %v974, 0.22916667
  %v979 = vsel %vm977, %v974, %v978
  %vm980 = vcmask 220368
  %981 = vst.msk [vmem:[#allocation2] sm:$0xff] %vm980, %v860
  %v983 = vsel %vm174, %v979, 0
  %v986 = vsel %vm178, %v888, 0
  %988 = vmatprep.subr.mxu0 0.0
  %989 = vmatpush1.msra.mxu0 %v884
  %990 = vmatprep.subr.mxu0 0.0
  %991 = vmatpush1.msra.mxu0 %v885
  %992 = vmatprep.subr.mxu0 0.0
  %993 = vmatpush1.msra.mxu0 %v886
  %994 = vmatprep.subr.mxu0 0.0
  %995 = vmatpush1.msra.mxu0 %v887
  %996 = vmatprep.subr.mxu0 0.0
  %997 = vmatpush1.msra.mxu0 %v986
  %998 = vmatprep.subr.mxu0 0.0
  %999 = vmatpush1.msra.mxu0 0.0
  %1000 = vmatprep.subr.mxu0 0.0
  %1001 = vmatpush1.msra.mxu0 0.0
  %1002 = vmatprep.subr.mxu0 0.0
  %1003 = vmatpush1.msra.mxu0 0.0
  %1004 = vmatprep.subr.mxu0 0.0
  %1005 = vmatpush1.msra.mxu0 0.0
  %1006 = vmatprep.subr.mxu0 0.0
  %1007 = vmatpush1.msra.mxu0 0.0
  %1008 = vmatprep.subr.mxu0 0.0
  %1009 = vmatpush1.msra.mxu0 0.0
  %1010 = vmatprep.subr.mxu0 0.0
  %1011 = vmatpush1.msra.mxu0 0.0
  %1012 = vmatprep.subr.mxu0 0.0
  %1013 = vmatpush1.msra.mxu0 0.0
  %1014 = vmatprep.subr.mxu0 0.0
  %1015 = vmatpush1.msra.mxu0 0.0
  %1016 = vmatprep.subr.mxu0 0.0
  %1017 = vmatpush1.msra.mxu0 0.0
  %1018 = vmatprep.subr.mxu0 0.0
  %1019 = vmatpush1.msra.mxu0 0.0
  %1020 = vmatprep.subr.mxu0 0.0
  %1021 = vmatpush1.msra.mxu0 0.0
  %1022 = vmatprep.subr.mxu0 0.0
  %1023 = vmatpush1.msra.mxu0 0.0
  %1024 = vmatprep.subr.mxu0 0.0
  %1025 = vmatpush1.msra.mxu0 0.0
  %1026 = vmatprep.subr.mxu0 0.0
  %1027 = vmatpush1.msra.mxu0 0.0
  %1028 = vmatprep.subr.mxu0 0.0
  %1029 = vmatpush1.msra.mxu0 0.0
  %1030 = vmatprep.subr.mxu0 0.0
  %1031 = vmatpush1.msra.mxu0 0.0
  %1032 = vmatprep.subr.mxu0 0.0
  %1033 = vmatpush1.msra.mxu0 0.0
  %1034 = vmatprep.subr.mxu0 0.0
  %1035 = vmatpush1.msra.mxu0 0.0
  %1036 = vmatprep.subr.mxu0 0.0
  %1037 = vmatpush1.msra.mxu0 0.0
  %1038 = vmatprep.subr.mxu0 0.0
  %1039 = vmatpush1.msra.mxu0 0.0
  %1040 = vmatprep.subr.mxu0 0.0
  %1041 = vmatpush1.msra.mxu0 0.0
  %1042 = vmatprep.subr.mxu0 0.0
  %1043 = vmatpush1.msra.mxu0 0.0
  %1044 = vmatprep.subr.mxu0 0.0
  %1045 = vmatpush1.msra.mxu0 0.0
  %1046 = vmatprep.subr.mxu0 0.0
  %1047 = vmatpush1.msra.mxu0 0.0
  %1048 = vmatprep.subr.mxu0 0.0
  %1049 = vmatpush1.msra.mxu0 0.0
  %1050 = vmatprep.subr.mxu0 0.0
  %1051 = vmatpush1.msra.mxu0 0.0
  %1052 = vmatprep.mubr.f32.mxu0 0.0
  %1053 = vmatmul.mubr.f32.gmra.mrb[0].mxu0 %v983
  %v1054 = vpop.f32.mrb[0].mxu0
  %v1055 = vadd.f32 0.0, %v1054
  %v1056 = vpop.f32.mrb[0].mxu0
  %1057 = vdwg.mxu0
  %vm1058 = vcmp.gt.f32.partialorder %v1055, 0.0
  %v1059 = vmul.f32 %v1055, 0.22916667
  %v1060 = vsel %vm1058, %v1055, %v1059
  %v1062 = vsel %vm174, %v1060, 0
  %v1065 = vsel %vm178, %v894, 0
  %1067 = vmatprep.subr.mxu0 0.0
  %1068 = vmatpush1.msra.mxu0 %v890
  %1069 = vmatprep.subr.mxu0 0.0
  %1070 = vmatpush1.msra.mxu0 %v891
  %1071 = vmatprep.subr.mxu0 0.0
  %1072 = vmatpush1.msra.mxu0 %v892
  %1073 = vmatprep.subr.mxu0 0.0
  %1074 = vmatpush1.msra.mxu0 %v893
  %1075 = vmatprep.subr.mxu0 0.0
  %1076 = vmatpush1.msra.mxu0 %v1065
  %1077 = vmatprep.subr.mxu0 0.0
  %1078 = vmatpush1.msra.mxu0 0.0
  %1079 = vmatprep.subr.mxu0 0.0
  %1080 = vmatpush1.msra.mxu0 0.0
  %1081 = vmatprep.subr.mxu0 0.0
  %1082 = vmatpush1.msra.mxu0 0.0
  %1083 = vmatprep.subr.mxu0 0.0
  %1084 = vmatpush1.msra.mxu0 0.0
  %1085 = vmatprep.subr.mxu0 0.0
  %1086 = vmatpush1.msra.mxu0 0.0
  %1087 = vmatprep.subr.mxu0 0.0
  %1088 = vmatpush1.msra.mxu0 0.0
  %1089 = vmatprep.subr.mxu0 0.0
  %1090 = vmatpush1.msra.mxu0 0.0
  %1091 = vmatprep.subr.mxu0 0.0
  %1092 = vmatpush1.msra.mxu0 0.0
  %1093 = vmatprep.subr.mxu0 0.0
  %1094 = vmatpush1.msra.mxu0 0.0
  %1095 = vmatprep.subr.mxu0 0.0
  %1096 = vmatpush1.msra.mxu0 0.0
  %1097 = vmatprep.subr.mxu0 0.0
  %1098 = vmatpush1.msra.mxu0 0.0
  %1099 = vmatprep.subr.mxu0 0.0
  %1100 = vmatpush1.msra.mxu0 0.0
  %1101 = vmatprep.subr.mxu0 0.0
  %1102 = vmatpush1.msra.mxu0 0.0
  %1103 = vmatprep.subr.mxu0 0.0
  %1104 = vmatpush1.msra.mxu0 0.0
  %1105 = vmatprep.subr.mxu0 0.0
  %1106 = vmatpush1.msra.mxu0 0.0
  %1107 = vmatprep.subr.mxu0 0.0
  %1108 = vmatpush1.msra.mxu0 0.0
  %1109 = vmatprep.subr.mxu0 0.0
  %1110 = vmatpush1.msra.mxu0 0.0
  %1111 = vmatprep.subr.mxu0 0.0
  %1112 = vmatpush1.msra.mxu0 0.0
  %1113 = vmatprep.subr.mxu0 0.0
  %1114 = vmatpush1.msra.mxu0 0.0
  %1115 = vmatprep.subr.mxu0 0.0
  %1116 = vmatpush1.msra.mxu0 0.0
  %1117 = vmatprep.subr.mxu0 0.0
  %1118 = vmatpush1.msra.mxu0 0.0
  %1119 = vmatprep.subr.mxu0 0.0
  %1120 = vmatpush1.msra.mxu0 0.0
  %1121 = vmatprep.subr.mxu0 0.0
  %1122 = vmatpush1.msra.mxu0 0.0
  %1123 = vmatprep.subr.mxu0 0.0
  %1124 = vmatpush1.msra.mxu0 0.0
  %1125 = vmatprep.subr.mxu0 0.0
  %1126 = vmatpush1.msra.mxu0 0.0
  %1127 = vmatprep.subr.mxu0 0.0
  %1128 = vmatpush1.msra.mxu0 0.0
  %1129 = vmatprep.subr.mxu0 0.0
  %1130 = vmatpush1.msra.mxu0 0.0
  %1131 = vmatprep.mubr.f32.mxu0 0.0
  %1132 = vmatmul.mubr.f32.gmra.mrb[0].mxu0 %v1062
  %v1133 = vpop.f32.mrb[0].mxu0
  %v1134 = vadd.f32 0.0, %v1133
  %v1135 = vpop.f32.mrb[0].mxu0
  %1136 = vdwg.mxu0
  %vm1137 = vcmp.gt.f32.partialorder %v1134, 0.0
  %v1138 = vmul.f32 %v1134, 0.22916667
  %v1139 = vsel %vm1137, %v1134, %v1138
  %v1141 = vsel %vm174, %v1139, 0
  %v1144 = vsel %vm178, %v900, 0
  %1146 = vmatprep.subr.mxu0 0.0
  %1147 = vmatpush1.msra.mxu0 %v896
  %1148 = vmatprep.subr.mxu0 0.0
  %1149 = vmatpush1.msra.mxu0 %v897
  %1150 = vmatprep.subr.mxu0 0.0
  %1151 = vmatpush1.msra.mxu0 %v898
  %1152 = vmatprep.subr.mxu0 0.0
  %1153 = vmatpush1.msra.mxu0 %v899
  %1154 = vmatprep.subr.mxu0 0.0
  %1155 = vmatpush1.msra.mxu0 %v1144
  %1156 = vmatprep.subr.mxu0 0.0
  %1157 = vmatpush1.msra.mxu0 0.0
  %1158 = vmatprep.subr.mxu0 0.0
  %1159 = vmatpush1.msra.mxu0 0.0
  %1160 = vmatprep.subr.mxu0 0.0
  %1161 = vmatpush1.msra.mxu0 0.0
  %1162 = vmatprep.subr.mxu0 0.0
  %1163 = vmatpush1.msra.mxu0 0.0
  %1164 = vmatprep.subr.mxu0 0.0
  %1165 = vmatpush1.msra.mxu0 0.0
  %1166 = vmatprep.subr.mxu0 0.0
  %1167 = vmatpush1.msra.mxu0 0.0
  %1168 = vmatprep.subr.mxu0 0.0
  %1169 = vmatpush1.msra.mxu0 0.0
  %1170 = vmatprep.subr.mxu0 0.0
  %1171 = vmatpush1.msra.mxu0 0.0
  %1172 = vmatprep.subr.mxu0 0.0
  %1173 = vmatpush1.msra.mxu0 0.0
  %1174 = vmatprep.subr.mxu0 0.0
  %1175 = vmatpush1.msra.mxu0 0.0
  %1176 = vmatprep.subr.mxu0 0.0
  %1177 = vmatpush1.msra.mxu0 0.0
  %1178 = vmatprep.subr.mxu0 0.0
  %1179 = vmatpush1.msra.mxu0 0.0
  %1180 = vmatprep.subr.mxu0 0.0
  %1181 = vmatpush1.msra.mxu0 0.0
  %1182 = vmatprep.subr.mxu0 0.0
  %1183 = vmatpush1.msra.mxu0 0.0
  %1184 = vmatprep.subr.mxu0 0.0
  %1185 = vmatpush1.msra.mxu0 0.0
  %1186 = vmatprep.subr.mxu0 0.0
  %1187 = vmatpush1.msra.mxu0 0.0
  %1188 = vmatprep.subr.mxu0 0.0
  %1189 = vmatpush1.msra.mxu0 0.0
  %1190 = vmatprep.subr.mxu0 0.0
  %1191 = vmatpush1.msra.mxu0 0.0
  %1192 = vmatprep.subr.mxu0 0.0
  %1193 = vmatpush1.msra.mxu0 0.0
  %1194 = vmatprep.subr.mxu0 0.0
  %1195 = vmatpush1.msra.mxu0 0.0
  %1196 = vmatprep.subr.mxu0 0.0
  %1197 = vmatpush1.msra.mxu0 0.0
  %1198 = vmatprep.subr.mxu0 0.0
  %1199 = vmatpush1.msra.mxu0 0.0
  %1200 = vmatprep.subr.mxu0 0.0
  %1201 = vmatpush1.msra.mxu0 0.0
  %1202 = vmatprep.subr.mxu0 0.0
  %1203 = vmatpush1.msra.mxu0 0.0
  %1204 = vmatprep.subr.mxu0 0.0
  %1205 = vmatpush1.msra.mxu0 0.0
  %1206 = vmatprep.subr.mxu0 0.0
  %1207 = vmatpush1.msra.mxu0 0.0
  %1208 = vmatprep.subr.mxu0 0.0
  %1209 = vmatpush1.msra.mxu0 0.0
  %1210 = vmatprep.mubr.f32.mxu0 0.0
  %1211 = vmatmul.mubr.f32.gmra.mrb[0].mxu0 %v1141
  %v1212 = vpop.f32.mrb[0].mxu0
  %v1213 = vadd.f32 0.0, %v1212
  %v1214 = vpop.f32.mrb[0].mxu0
  %1215 = vdwg.mxu0
  %vm1216 = vcmp.gt.f32.partialorder %v1213, 0.0
  %v1217 = vmul.f32 %v1213, 0.22916667
  %v1218 = vsel %vm1216, %v1213, %v1217
  %v1219 = vsel %vm27, %v1218, -inf
  %1220 = vmax.xlane.f32.xlu0 %v1219
  %v1221 = vpop.xlane.xlu0 %1220
  %v1222 = vsub.f32 %v1218, %v1221
  %v1223 = vmul.f32 %v1222, 1.442695
  %v1224 = vpow.pop %v1223
  %v1225 = vsel %vm27, %v1224, 0.0
  %1226 = vadd.xlane.f32.xlu0 %v1225
  %v1227 = vpop.xlane.xlu0 %1226
  %v1228 = vrcp.pop %v1227
  %v1229 = vmul.f32 %v1224, %v1228
  %1231 = vrot.lane.b32.xlu0 %v1229, 16
  %v1232 = vpop.permute.xlu0 %1231
  %vm1234 = vcmask 195712
  %1235 = vst.msk [vmem:[%s5] sm:$0xff] %vm1234, %v1232
  %1236 = vrot.lane.b32.xlu0 %v1229, 27
  %v1237 = vpop.permute.xlu0 %1236
  %vm1239 = vcmask 285912
  %1240 = vst.msk [vmem:[#allocation2] sm:$0xff] %vm1239, %v1237
  %v1241 = vsel %vm27, %v1229, -inf
  %1242 = vmax.xlane.f32.xlu0 %v1241
  %v1243 = vpop.xlane.xlu0 %1242
  %vm1244 = vcmp.eq.f32.partialorder %v1229, %v1243
  %v1245 = vsel %vm1244, %v22, 8
  %v1246 = vsel %vm27, %v1245, 2147483647
  %v1247 = vand.u32 %v1246, 65535
  %v1248 = vshra.s32 %v1246, 16
  %v1249 = vcvt.s32.f32 %v1247
  %v1250 = vcvt.s32.f32 %v1248
  %1251 = vmin.xlane.f32.xlu0 %v1250
  %v1252 = vpop.xlane.xlu0 %1251
  %vm1253 = vcmp.eq.f32.partialorder %v1250, %v1252
  %v1254 = vsel %vm1253, %v1249, inf
  %1255 = vmin.xlane.f32.xlu0 %v1254
  %v1256 = vpop.xlane.xlu0 %1255
  %v1257 = vcvt.f32.s32 %v1256
  %v1258 = vcvt.f32.s32 %v1252
  %v1259 = vshll.u32 %v1258, 16
  %v1260 = vadd.s32 %v1259, %v1257
  %vm1261 = vcmp.eq.s32.totalorder %v22, %v1260
  %v1262 = vsel %vm1261, %v51, 0.0
  %v1263 = vsel %vm27, %v1262, 0.0
  %1264 = vadd.xlane.f32.xlu0 %v1263
  %v1265 = vpop.xlane.xlu0 %1264
  %vm1266 = vcmask 294168
  %1267 = vst.msk [vmem:[%s5] sm:$0xff] %vm1266, %v1265
  %v1268 = vcvt.s32.f32 %v1260
  %vm1269 = vcmask 335168
  %1270 = vst.msk [vmem:[%s5] sm:$0xff] %vm1269, %v1268
  %s1271 = scalar_lea.vmem %s1, 384
  %v1272 = vld [vmem:[%s1271] sm:$0xff]
  %v1273 = vld [vmem:[%s1271 + $0x8] sm:$0xff]
  %v1274 = vld [vmem:[%s1271 + $0x10] sm:$0xff]
  %v1275 = vld [vmem:[%s1271 + $0x18] sm:$0xff]
  %v1276 = vld [vmem:[%s1271 + $0x20] sm:$0xff]
  %v1277 = vld [vmem:[%s1271 + $0x28] sm:$0xff]
  %v1278 = vld [vmem:[%s1271 + $0x30] sm:$0xff]
  %v1279 = vld [vmem:[%s1271 + $0x38] sm:$0xff]
  %v1280 = vld [vmem:[%s1271 + $0x40] sm:$0xff]
  %v1281 = vld [vmem:[%s1271 + $0x48] sm:$0xff]
  %v1282 = vld [vmem:[%s1271 + $0x50] sm:$0xff]
  %v1283 = vld [vmem:[%s1271 + $0x58] sm:$0xff]
  %v1284 = vld [vmem:[%s1271 + $0x60] sm:$0xff]
  %v1285 = vld [vmem:[%s1271 + $0x68] sm:$0xff]
  %v1286 = vld [vmem:[%s1271 + $0x70] sm:$0xff]
  %v1287 = vld [vmem:[%s1271 + $0x78] sm:$0xff]
  %s1288 = scalar_lea.vmem %s2, 120
  %v1289 = vld [vmem:[%s1288] sm:$0xff]
  %v1290 = vld [vmem:[%s1288 + $0x8] sm:$0xff]
  %v1291 = vld [vmem:[%s1288 + $0x10] sm:$0xff]
  %v1292 = vld [vmem:[%s1288 + $0x18] sm:$0xff]
  %v1293 = vld [vmem:[%s1288 + $0x20] sm:$0x1]
  %s1294 = scalar_lea.vmem %s3, 120
  %v1295 = vld [vmem:[%s1294] sm:$0xff]
  %v1296 = vld [vmem:[%s1294 + $0x8] sm:$0xff]
  %v1297 = vld [vmem:[%s1294 + $0x10] sm:$0xff]
  %v1298 = vld [vmem:[%s1294 + $0x18] sm:$0xff]
  %v1299 = vld [vmem:[%s1294 + $0x20] sm:$0x1]
  %s1300 = scalar_lea.vmem %s4, 120
  %v1301 = vld [vmem:[%s1300] sm:$0xff]
  %v1302 = vld [vmem:[%s1300 + $0x8] sm:$0xff]
  %v1303 = vld [vmem:[%s1300 + $0x10] sm:$0xff]
  %v1304 = vld [vmem:[%s1300 + $0x18] sm:$0xff]
  %v1305 = vld [vmem:[%s1300 + $0x20] sm:$0x1]
  %v1306 = vld [vmem:[#allocation2] sm:$0xff]
  %v1307 = vlaneseq
  %v1308 = vshrl.u32 %v1307, 7
  %v1309 = vsub.s32 3, %v1308
  %v1310 = vrot.slane %v1276, %v1309
  %v1311 = vmul.f32 %v1265, %v1310
  %1312 = vmatprep.subr.mxu0 0.0
  %1313 = vmatpush1.msra.mxu0 %v1272
  %1314 = vmatprep.subr.mxu0 0.0
  %1315 = vmatpush1.msra.mxu0 %v1273
  %1316 = vmatprep.subr.mxu0 0.0
  %1317 = vmatpush1.msra.mxu0 %v1274
  %1318 = vmatprep.subr.mxu0 0.0
  %1319 = vmatpush1.msra.mxu0 %v1275
  %1320 = vmatprep.subr.mxu0 0.0
  %1321 = vmatpush1.msra.mxu0 %v1276
  %1322 = vmatprep.subr.mxu0 0.0
  %1323 = vmatpush1.msra.mxu0 %v1277
  %1324 = vmatprep.subr.mxu0 0.0
  %1325 = vmatpush1.msra.mxu0 %v1278
  %1326 = vmatprep.subr.mxu0 0.0
  %1327 = vmatpush1.msra.mxu0 %v1279
  %1328 = vmatprep.subr.mxu0 0.0
  %1329 = vmatpush1.msra.mxu0 %v1280
  %1330 = vmatprep.subr.mxu0 0.0
  %1331 = vmatpush1.msra.mxu0 %v1281
  %1332 = vmatprep.subr.mxu0 0.0
  %1333 = vmatpush1.msra.mxu0 %v1282
  %1334 = vmatprep.subr.mxu0 0.0
  %1335 = vmatpush1.msra.mxu0 %v1283
  %1336 = vmatprep.subr.mxu0 0.0
  %1337 = vmatpush1.msra.mxu0 %v1284
  %1338 = vmatprep.subr.mxu0 0.0
  %1339 = vmatpush1.msra.mxu0 %v1285
  %1340 = vmatprep.subr.mxu0 0.0
  %1341 = vmatpush1.msra.mxu0 %v1286
  %1342 = vmatprep.subr.mxu0 0.0
  %1343 = vmatpush1.msra.mxu0 %v1287
  %1344 = vmatprep.subr.mxu0 0.0
  %1345 = vmatpush1.msra.mxu0 0.0
  %1346 = vmatprep.subr.mxu0 0.0
  %1347 = vmatpush1.msra.mxu0 0.0
  %1348 = vmatprep.subr.mxu0 0.0
  %1349 = vmatpush1.msra.mxu0 0.0
  %1350 = vmatprep.subr.mxu0 0.0
  %1351 = vmatpush1.msra.mxu0 0.0
  %1352 = vmatprep.subr.mxu0 0.0
  %1353 = vmatpush1.msra.mxu0 0.0
  %1354 = vmatprep.subr.mxu0 0.0
  %1355 = vmatpush1.msra.mxu0 0.0
  %1356 = vmatprep.subr.mxu0 0.0
  %1357 = vmatpush1.msra.mxu0 0.0
  %1358 = vmatprep.subr.mxu0 0.0
  %1359 = vmatpush1.msra.mxu0 0.0
  %1360 = vmatprep.subr.mxu0 0.0
  %1361 = vmatpush1.msra.mxu0 0.0
  %1362 = vmatprep.subr.mxu0 0.0
  %1363 = vmatpush1.msra.mxu0 0.0
  %1364 = vmatprep.subr.mxu0 0.0
  %1365 = vmatpush1.msra.mxu0 0.0
  %1366 = vmatprep.subr.mxu0 0.0
  %1367 = vmatpush1.msra.mxu0 0.0
  %1368 = vmatprep.subr.mxu0 0.0
  %1369 = vmatpush1.msra.mxu0 0.0
  %1370 = vmatprep.subr.mxu0 0.0
  %1371 = vmatpush1.msra.mxu0 0.0
  %1372 = vmatprep.subr.mxu0 0.0
  %1373 = vmatpush1.msra.mxu0 0.0
  %1374 = vmatprep.subr.mxu0 0.0
  %1375 = vmatpush1.msra.mxu0 0.0
  %1376 = vmatprep.mubr.f32.mxu0 0.0
  %1377 = vmatmul.mubr.f32.gmra.mrb[0].mxu0 %v1306
  %v1378 = vpop.f32.mrb[0].mxu0
  %v1379 = vadd.f32 %v1311, %v1378
  %v1380 = vpop.f32.mrb[0].mxu0
  %1381 = vdwg.mxu0
  %vm1382 = vcmp.gt.f32.partialorder %v1379, 0.0
  %v1383 = vmul.f32 %v1379, 0.22916667
  %v1384 = vsel %vm1382, %v1379, %v1383
  %v1386 = vsel %vm174, %v1384, 0
  %v1389 = vsel %vm178, %v1293, 0
  %1391 = vmatprep.subr.mxu0 0.0
  %1392 = vmatpush1.msra.mxu0 %v1289
  %1393 = vmatprep.subr.mxu0 0.0
  %1394 = vmatpush1.msra.mxu0 %v1290
  %1395 = vmatprep.subr.mxu0 0.0
  %1396 = vmatpush1.msra.mxu0 %v1291
  %1397 = vmatprep.subr.mxu0 0.0
  %1398 = vmatpush1.msra.mxu0 %v1292
  %1399 = vmatprep.subr.mxu0 0.0
  %1400 = vmatpush1.msra.mxu0 %v1389
  %1401 = vmatprep.subr.mxu0 0.0
  %1402 = vmatpush1.msra.mxu0 0.0
  %1403 = vmatprep.subr.mxu0 0.0
  %1404 = vmatpush1.msra.mxu0 0.0
  %1405 = vmatprep.subr.mxu0 0.0
  %1406 = vmatpush1.msra.mxu0 0.0
  %1407 = vmatprep.subr.mxu0 0.0
  %1408 = vmatpush1.msra.mxu0 0.0
  %1409 = vmatprep.subr.mxu0 0.0
  %1410 = vmatpush1.msra.mxu0 0.0
  %1411 = vmatprep.subr.mxu0 0.0
  %1412 = vmatpush1.msra.mxu0 0.0
  %1413 = vmatprep.subr.mxu0 0.0
  %1414 = vmatpush1.msra.mxu0 0.0
  %1415 = vmatprep.subr.mxu0 0.0
  %1416 = vmatpush1.msra.mxu0 0.0
  %1417 = vmatprep.subr.mxu0 0.0
  %1418 = vmatpush1.msra.mxu0 0.0
  %1419 = vmatprep.subr.mxu0 0.0
  %1420 = vmatpush1.msra.mxu0 0.0
  %1421 = vmatprep.subr.mxu0 0.0
  %1422 = vmatpush1.msra.mxu0 0.0
  %1423 = vmatprep.subr.mxu0 0.0
  %1424 = vmatpush1.msra.mxu0 0.0
  %1425 = vmatprep.subr.mxu0 0.0
  %1426 = vmatpush1.msra.mxu0 0.0
  %1427 = vmatprep.subr.mxu0 0.0
  %1428 = vmatpush1.msra.mxu0 0.0
  %1429 = vmatprep.subr.mxu0 0.0
  %1430 = vmatpush1.msra.mxu0 0.0
  %1431 = vmatprep.subr.mxu0 0.0
  %1432 = vmatpush1.msra.mxu0 0.0
  %1433 = vmatprep.subr.mxu0 0.0
  %1434 = vmatpush1.msra.mxu0 0.0
  %1435 = vmatprep.subr.mxu0 0.0
  %1436 = vmatpush1.msra.mxu0 0.0
  %1437 = vmatprep.subr.mxu0 0.0
  %1438 = vmatpush1.msra.mxu0 0.0
  %1439 = vmatprep.subr.mxu0 0.0
  %1440 = vmatpush1.msra.mxu0 0.0
  %1441 = vmatprep.subr.mxu0 0.0
  %1442 = vmatpush1.msra.mxu0 0.0
  %1443 = vmatprep.subr.mxu0 0.0
  %1444 = vmatpush1.msra.mxu0 0.0
  %1445 = vmatprep.subr.mxu0 0.0
  %1446 = vmatpush1.msra.mxu0 0.0
  %1447 = vmatprep.subr.mxu0 0.0
  %1448 = vmatpush1.msra.mxu0 0.0
  %1449 = vmatprep.subr.mxu0 0.0
  %1450 = vmatpush1.msra.mxu0 0.0
  %1451 = vmatprep.subr.mxu0 0.0
  %1452 = vmatpush1.msra.mxu0 0.0
  %1453 = vmatprep.subr.mxu0 0.0
  %1454 = vmatpush1.msra.mxu0 0.0
  %1455 = vmatprep.mubr.f32.mxu0 0.0
  %1456 = vmatmul.mubr.f32.gmra.mrb[0].mxu0 %v1386
  %v1457 = vpop.f32.mrb[0].mxu0
  %v1458 = vadd.f32 0.0, %v1457
  %v1459 = vpop.f32.mrb[0].mxu0
  %1460 = vdwg.mxu0
  %vm1461 = vcmp.gt.f32.partialorder %v1458, 0.0
  %v1462 = vmul.f32 %v1458, 0.22916667
  %v1463 = vsel %vm1461, %v1458, %v1462
  %v1465 = vsel %vm174, %v1463, 0
  %v1468 = vsel %vm178, %v1299, 0
  %1470 = vmatprep.subr.mxu0 0.0
  %1471 = vmatpush1.msra.mxu0 %v1295
  %1472 = vmatprep.subr.mxu0 0.0
  %1473 = vmatpush1.msra.mxu0 %v1296
  %1474 = vmatprep.subr.mxu0 0.0
  %1475 = vmatpush1.msra.mxu0 %v1297
  %1476 = vmatprep.subr.mxu0 0.0
  %1477 = vmatpush1.msra.mxu0 %v1298
  %1478 = vmatprep.subr.mxu0 0.0
  %1479 = vmatpush1.msra.mxu0 %v1468
  %1480 = vmatprep.subr.mxu0 0.0
  %1481 = vmatpush1.msra.mxu0 0.0
  %1482 = vmatprep.subr.mxu0 0.0
  %1483 = vmatpush1.msra.mxu0 0.0
  %1484 = vmatprep.subr.mxu0 0.0
  %1485 = vmatpush1.msra.mxu0 0.0
  %1486 = vmatprep.subr.mxu0 0.0
  %1487 = vmatpush1.msra.mxu0 0.0
  %1488 = vmatprep.subr.mxu0 0.0
  %1489 = vmatpush1.msra.mxu0 0.0
  %1490 = vmatprep.subr.mxu0 0.0
  %1491 = vmatpush1.msra.mxu0 0.0
  %1492 = vmatprep.subr.mxu0 0.0
  %1493 = vmatpush1.msra.mxu0 0.0
  %1494 = vmatprep.subr.mxu0 0.0
  %1495 = vmatpush1.msra.mxu0 0.0
  %1496 = vmatprep.subr.mxu0 0.0
  %1497 = vmatpush1.msra.mxu0 0.0
  %1498 = vmatprep.subr.mxu0 0.0
  %1499 = vmatpush1.msra.mxu0 0.0
  %1500 = vmatprep.subr.mxu0 0.0
  %1501 = vmatpush1.msra.mxu0 0.0
  %1502 = vmatprep.subr.mxu0 0.0
  %1503 = vmatpush1.msra.mxu0 0.0
  %1504 = vmatprep.subr.mxu0 0.0
  %1505 = vmatpush1.msra.mxu0 0.0
  %1506 = vmatprep.subr.mxu0 0.0
  %1507 = vmatpush1.msra.mxu0 0.0
  %1508 = vmatprep.subr.mxu0 0.0
  %1509 = vmatpush1.msra.mxu0 0.0
  %1510 = vmatprep.subr.mxu0 0.0
  %1511 = vmatpush1.msra.mxu0 0.0
  %1512 = vmatprep.subr.mxu0 0.0
  %1513 = vmatpush1.msra.mxu0 0.0
  %1514 = vmatprep.subr.mxu0 0.0
  %1515 = vmatpush1.msra.mxu0 0.0
  %1516 = vmatprep.subr.mxu0 0.0
  %1517 = vmatpush1.msra.mxu0 0.0
  %1518 = vmatprep.subr.mxu0 0.0
  %1519 = vmatpush1.msra.mxu0 0.0
  %1520 = vmatprep.subr.mxu0 0.0
  %1521 = vmatpush1.msra.mxu0 0.0
  %1522 = vmatprep.subr.mxu0 0.0
  %1523 = vmatpush1.msra.mxu0 0.0
  %1524 = vmatprep.subr.mxu0 0.0
  %1525 = vmatpush1.msra.mxu0 0.0
  %1526 = vmatprep.subr.mxu0 0.0
  %1527 = vmatpush1.msra.mxu0 0.0
  %1528 = vmatprep.subr.mxu0 0.0
  %1529 = vmatpush1.msra.mxu0 0.0
  %1530 = vmatprep.subr.mxu0 0.0
  %1531 = vmatpush1.msra.mxu0 0.0
  %1532 = vmatprep.subr.mxu0 0.0
  %1533 = vmatpush1.msra.mxu0 0.0
  %1534 = vmatprep.mubr.f32.mxu0 0.0
  %1535 = vmatmul.mubr.f32.gmra.mrb[0].mxu0 %v1465
  %v1536 = vpop.f32.mrb[0].mxu0
  %v1537 = vadd.f32 0.0, %v1536
  %v1538 = vpop.f32.mrb[0].mxu0
  %1539 = vdwg.mxu0
  %vm1540 = vcmp.gt.f32.partialorder %v1537, 0.0
  %v1541 = vmul.f32 %v1537, 0.22916667
  %v1542 = vsel %vm1540, %v1537, %v1541
  %v1544 = vsel %vm174, %v1542, 0
  %v1547 = vsel %vm178, %v1305, 0
  %1549 = vmatprep.subr.mxu0 0.0
  %1550 = vmatpush1.msra.mxu0 %v1301
  %1551 = vmatprep.subr.mxu0 0.0
  %1552 = vmatpush1.msra.mxu0 %v1302
  %1553 = vmatprep.subr.mxu0 0.0
  %1554 = vmatpush1.msra.mxu0 %v1303
  %1555 = vmatprep.subr.mxu0 0.0
  %1556 = vmatpush1.msra.mxu0 %v1304
  %1557 = vmatprep.subr.mxu0 0.0
  %1558 = vmatpush1.msra.mxu0 %v1547
  %1559 = vmatprep.subr.mxu0 0.0
  %1560 = vmatpush1.msra.mxu0 0.0
  %1561 = vmatprep.subr.mxu0 0.0
  %1562 = vmatpush1.msra.mxu0 0.0
  %1563 = vmatprep.subr.mxu0 0.0
  %1564 = vmatpush1.msra.mxu0 0.0
  %1565 = vmatprep.subr.mxu0 0.0
  %1566 = vmatpush1.msra.mxu0 0.0
  %1567 = vmatprep.subr.mxu0 0.0
  %1568 = vmatpush1.msra.mxu0 0.0
  %1569 = vmatprep.subr.mxu0 0.0
  %1570 = vmatpush1.msra.mxu0 0.0
  %1571 = vmatprep.subr.mxu0 0.0
  %1572 = vmatpush1.msra.mxu0 0.0
  %1573 = vmatprep.subr.mxu0 0.0
  %1574 = vmatpush1.msra.mxu0 0.0
  %1575 = vmatprep.subr.mxu0 0.0
  %1576 = vmatpush1.msra.mxu0 0.0
  %1577 = vmatprep.subr.mxu0 0.0
  %1578 = vmatpush1.msra.mxu0 0.0
  %1579 = vmatprep.subr.mxu0 0.0
  %1580 = vmatpush1.msra.mxu0 0.0
  %1581 = vmatprep.subr.mxu0 0.0
  %1582 = vmatpush1.msra.mxu0 0.0
  %1583 = vmatprep.subr.mxu0 0.0
  %1584 = vmatpush1.msra.mxu0 0.0
  %1585 = vmatprep.subr.mxu0 0.0
  %1586 = vmatpush1.msra.mxu0 0.0
  %1587 = vmatprep.subr.mxu0 0.0
  %1588 = vmatpush1.msra.mxu0 0.0
  %1589 = vmatprep.subr.mxu0 0.0
  %1590 = vmatpush1.msra.mxu0 0.0
  %1591 = vmatprep.subr.mxu0 0.0
  %1592 = vmatpush1.msra.mxu0 0.0
  %1593 = vmatprep.subr.mxu0 0.0
  %1594 = vmatpush1.msra.mxu0 0.0
  %1595 = vmatprep.subr.mxu0 0.0
  %1596 = vmatpush1.msra.mxu0 0.0
  %1597 = vmatprep.subr.mxu0 0.0
  %1598 = vmatpush1.msra.mxu0 0.0
  %1599 = vmatprep.subr.mxu0 0.0
  %1600 = vmatpush1.msra.mxu0 0.0
  %1601 = vmatprep.subr.mxu0 0.0
  %1602 = vmatpush1.msra.mxu0 0.0
  %1603 = vmatprep.subr.mxu0 0.0
  %1604 = vmatpush1.msra.mxu0 0.0
  %1605 = vmatprep.subr.mxu0 0.0
  %1606 = vmatpush1.msra.mxu0 0.0
  %1607 = vmatprep.subr.mxu0 0.0
  %1608 = vmatpush1.msra.mxu0 0.0
  %1609 = vmatprep.subr.mxu0 0.0
  %1610 = vmatpush1.msra.mxu0 0.0
  %1611 = vmatprep.subr.mxu0 0.0
  %1612 = vmatpush1.msra.mxu0 0.0
  %1613 = vmatprep.mubr.f32.mxu0 0.0
  %1614 = vmatmul.mubr.f32.gmra.mrb[0].mxu0 %v1544
  %v1615 = vpop.f32.mrb[0].mxu0
  %v1616 = vadd.f32 0.0, %v1615
  %v1617 = vpop.f32.mrb[0].mxu0
  %1618 = vdwg.mxu0
  %vm1619 = vcmp.gt.f32.partialorder %v1616, 0.0
  %v1620 = vmul.f32 %v1616, 0.22916667
  %v1621 = vsel %vm1619, %v1616, %v1620
  %v1622 = vsel %vm27, %v1621, -inf
  %1623 = vmax.xlane.f32.xlu0 %v1622
  %v1624 = vpop.xlane.xlu0 %1623
  %v1625 = vsub.f32 %v1621, %v1624
  %v1626 = vmul.f32 %v1625, 1.442695
  %v1627 = vpow.pop %v1626
  %v1628 = vsel %vm27, %v1627, 0.0
  %1629 = vadd.xlane.f32.xlu0 %v1628
  %v1630 = vpop.xlane.xlu0 %1629
  %v1631 = vrcp.pop %v1630
  %v1632 = vmul.f32 %v1627, %v1631
  %1634 = vrot.lane.b32.xlu0 %v1632, 24
  %v1635 = vpop.permute.xlu0 %1634
  %vm1637 = vcmask 261312
  %1638 = vst.msk [vmem:[%s5] sm:$0xff] %vm1637, %v1635
  %v1639 = vsel %vm27, %v1632, -inf
  %1640 = vmax.xlane.f32.xlu0 %v1639
  %v1641 = vpop.xlane.xlu0 %1640
  %vm1642 = vcmp.eq.f32.partialorder %v1632, %v1641
  %v1643 = vsel %vm1642, %v22, 8
  %v1644 = vsel %vm27, %v1643, 2147483647
  %v1645 = vand.u32 %v1644, 65535
  %v1646 = vshra.s32 %v1644, 16
  %v1647 = vcvt.s32.f32 %v1645
  %v1648 = vcvt.s32.f32 %v1646
  %1649 = vmin.xlane.f32.xlu0 %v1648
  %v1650 = vpop.xlane.xlu0 %1649
  %vm1651 = vcmp.eq.f32.partialorder %v1648, %v1650
  %v1652 = vsel %vm1651, %v1647, inf
  %1653 = vmin.xlane.f32.xlu0 %v1652
  %v1654 = vpop.xlane.xlu0 %1653
  %v1655 = vcvt.f32.s32 %v1654
  %v1656 = vcvt.f32.s32 %v1650
  %v1657 = vshll.u32 %v1656, 16
  %v1658 = vadd.s32 %v1657, %v1655
  %vm1659 = vcmp.eq.s32.totalorder %v22, %v1658
  %v1660 = vsel %vm1659, %v51, 0.0
  %v1661 = vsel %vm27, %v1660, 0.0
  %1662 = vadd.xlane.f32.xlu0 %v1661
  %v1663 = vpop.xlane.xlu0 %1662
  %vm1664 = vcmask 302368
  %1665 = vst.msk [vmem:[%s5] sm:$0xff] %vm1664, %v1663
  %v1666 = vcvt.s32.f32 %v1658
  %vm1667 = vcmask 343368
  %1668 = vst.msk [vmem:[%s5] sm:$0xff] %vm1667, %v1666
  // Predicated region
  $region22: #{_fused_forward.1} parent=0 // pred_check
    _
  $region23: #{_fused_forward.1} parent=0 // pred_check_branch
    %1670 = sbr.rel (0) target = $region25
  $region24: #{_fused_forward.1} parent=0 // pred_region
    _
  $region25: #{_fused_forward.1} parent=0 // pred_fallthru
    _
  // Predicated region
  $region26: #{_fused_forward.1} parent=0 // pred_check
    _
  $region27: #{_fused_forward.1} parent=0 // pred_check_branch
    %1672 = sbr.rel (0) target = $region29
  $region28: #{_fused_forward.1} parent=0 // pred_region
    _
  $region29: #{_fused_forward.1} parent=0 // pred_fallthru
    _

</llo_original>
